<compile_context>
chip_gen: v7x
topology: tpu7x:2x2x1
jax: 0.10.0
libtpu: 0.0.40
codegen_flags: <defaults>
</compile_context>

<pallas_src>
import functools
import math

import jax
import jax.numpy as jnp
from jax.experimental import pallas as pl
from jax.experimental.pallas import tpu as pltpu


def _round_up(v, m):
    return ((v + m - 1) // m) * m


def _conv_bn_act_kernel(x_main_ref, x_halo_ref, w_ref, scale_ref, shift_ref,
                        out_ref, patch_ref, *, TH, W, Kh, Kw, act):
    """One (batch, row-tile, cout-tile) grid step.

    x_main_ref : (TH, Wp, Cin)      bf16, padded-image rows [h*TH, h*TH+TH)
    x_halo_ref : (Kh-1, Wp, Cin)    bf16, the (Kh-1) halo rows just below the tile
    w_ref      : (Kh*Kw*Cin, TCO)   bf16, im2col-ordered weights for this cout tile
    scale_ref  : (1, TCO)           f32 fused BN scale
    shift_ref  : (1, TCO)           f32 fused BN shift (conv bias folded in)
    out_ref    : (TH*W, TCO)        lane-dense output tile
    patch_ref  : (TH*W, Kh*Kw*Cin)  bf16 im2col scratch, reused across cout tiles
    """
    co = pl.program_id(2)

    # Build the im2col slab once per (n, row-tile); reuse it for every cout tile.
    @pl.when(co == 0)
    def _():
        full = jnp.concatenate([x_main_ref[...], x_halo_ref[...]], axis=0)
        cols = [full[kh:kh + TH, kw:kw + W, :]
                for kh in range(Kh) for kw in range(Kw)]
        patch_ref[...] = jnp.concatenate(cols, axis=-1).reshape(TH * W, -1)

    # Single MXU matmul with K = Kh*Kw*Cin (taps folded into K), f32 accumulation.
    acc = jnp.dot(patch_ref[...], w_ref[...], preferred_element_type=jnp.float32)
    y = acc * scale_ref[...] + shift_ref[...]
    if act:
        y = jnp.maximum(y, 0.0)
    out_ref[...] = y.astype(out_ref.dtype)


def conv_block_pallas(x, weight, bias=None, *, norm_type='bn', gamma=None,
                      beta=None, running_mean=None, running_var=None,
                      eps=1e-5, activation=True, compute_dtype=jnp.bfloat16,
                      block_budget_bytes=12 * 1024 * 1024):
    """x: NCHW, weight: (Cout, Cin, Kh, Kw) (PyTorch layout). Returns NCHW.

    Fused Conv2d(stride=1, padding='same', dilation=1, groups=1) + BatchNorm2d
    (inference mode, folded into per-channel scale/shift) + ReLU.
    """
    N, Cin, H, W = x.shape
    Cout, Cin_w, Kh, Kw = weight.shape
    # TODO(synk): grouped conv (groups != 1), stride != 1 and non-'same' padding are not
    # implemented (the module defaults are 3x3 / stride 1 / padding 1 / groups 1).
    assert Cin_w == Cin and Kh % 2 == 1 and Kw % 2 == 1 and Kh >= 3
    ph, pw = Kh // 2, Kw // 2
    Wp = W + 2 * pw
    KK = Kh * Kw
    HALO = Kh - 1
    f32 = jnp.float32

    # ---- lane-dense output-channel tiling ----
    Cout_p = _round_up(Cout, 128)
    TCO = 256 if (Cout_p >= 256 and Cout_p % 256 == 0) else 128
    num_co = Cout_p // TCO

    # ---- row tiling: largest TH (multiple of lcm(8, HALO)) within the VMEM block budget ----
    step = 8 * HALO // math.gcd(8, HALO)
    th_cap = _round_up(H, step)
    xb = jnp.dtype(compute_dtype).itemsize
    ob = jnp.dtype(x.dtype).itemsize
    TH = step
    for t in range(step, th_cap + 1, step):
        foot = (2 * t * Wp * Cin * xb            # x main block (double-buffered)
                + 2 * HALO * Wp * Cin * xb       # x halo block
                + 2 * KK * Cin * TCO * xb        # weight block
                + 2 * 2 * TCO * 4                # scale/shift blocks
                + 2 * t * W * TCO * ob           # output block
                + t * W * KK * Cin * xb)         # im2col scratch
        if foot <= block_budget_bytes:
            TH = t
        else:
            break
    num_h = -(-H // TH)

    # ---- wrapper-side layout prep (NHWC, zero pad, bf16 cast) ----
    # TODO(synk): keeping activations NHWC end-to-end across layers would remove the
    # NCHW<->NHWC transposes and allow in-kernel padding (fewer HBM passes).
    Hp = num_h * TH + HALO
    x_nhwc = jnp.transpose(x, (0, 2, 3, 1)).astype(compute_dtype)
    x_pad = jnp.pad(x_nhwc, ((0, 0), (ph, Hp - ph - H), (pw, pw), (0, 0)))

    # (Cout, Cin, Kh, Kw) -> (Kh*Kw*Cin, Cout_p); rows ordered (kh, kw, cin) to match the
    # kernel's im2col concatenation order; output channels zero-padded to Cout_p.
    w_flat = jnp.transpose(weight, (2, 3, 1, 0)).reshape(KK * Cin, Cout)
    w_flat = jnp.pad(w_flat, ((0, 0), (0, Cout_p - Cout))).astype(compute_dtype)

    # ---- fold conv bias + BatchNorm (eval) into one per-channel scale/shift ----
    if bias is None:
        bias = jnp.zeros((Cout,), f32)
    bias = bias.astype(f32)
    if norm_type == 'bn':
        inv = gamma.astype(f32) * jax.lax.rsqrt(running_var.astype(f32) + eps)
        scale = inv
        shift = (bias - running_mean.astype(f32)) * inv + beta.astype(f32)
    elif norm_type is None:
        scale = jnp.ones((Cout,), f32)
        shift = bias
    else:
        # TODO(synk): GroupNorm ('gn') needs per-group stats over the conv output
        # (a second reduction pass); not implemented here.
        raise NotImplementedError(f"norm_type={norm_type!r} not implemented")
    scale = jnp.pad(scale, (0, Cout_p - Cout)).reshape(1, Cout_p).astype(f32)
    shift = jnp.pad(shift, (0, Cout_p - Cout)).reshape(1, Cout_p).astype(f32)

    kernel = functools.partial(_conv_bn_act_kernel, TH=TH, W=W, Kh=Kh, Kw=Kw,
                               act=activation)
    halo_blk = TH // HALO  # halo BlockSpec row-block stride per row tile

    out = pl.pallas_call(
        kernel,
        out_shape=jax.ShapeDtypeStruct((N, num_h * TH * W, Cout_p), x.dtype),
        grid_spec=pltpu.PrefetchScalarGridSpec(
            num_scalar_prefetch=0,
            grid=(N, num_h, num_co),
            in_specs=[
                # main row tile: padded rows [h*TH, h*TH + TH)
                pl.BlockSpec((pl.Squeezed(), TH, Wp, Cin),
                             lambda n, h, co: (n, h, 0, 0)),
                # halo rows [(h+1)*TH, (h+1)*TH + (Kh-1)) via (Kh-1)-row blocking
                pl.BlockSpec((pl.Squeezed(), HALO, Wp, Cin),
                             lambda n, h, co: (n, (h + 1) * halo_blk, 0, 0)),
                pl.BlockSpec((KK * Cin, TCO), lambda n, h, co: (0, co)),
                pl.BlockSpec((1, TCO), lambda n, h, co: (0, co)),
                pl.BlockSpec((1, TCO), lambda n, h, co: (0, co)),
            ],
            out_specs=pl.BlockSpec((pl.Squeezed(), TH * W, TCO),
                                   lambda n, h, co: (n, h, co)),
            scratch_shapes=[pltpu.VMEM((TH * W, KK * Cin), compute_dtype)],
        ),
        compiler_params=pltpu.CompilerParams(
            dimension_semantics=("parallel", "parallel", "arbitrary"),
            vmem_limit_bytes=48 * 1024 * 1024),
    )(x_pad, x_pad, w_flat, scale, shift)

    out = out.reshape(N, num_h * TH, W, Cout_p)[:, :H, :, :Cout]
    return jnp.transpose(out, (0, 3, 1, 2))


class ConvBlock:
    """JAX/Pallas equivalent of the PyTorch conv_block (inference-mode BN)."""

    def __init__(self, in_features, out_features, key, norm_type='bn',
                 activation=True, use_bias=True):
        kw_, kb_, kg_, kbe_, km_, kv_ = jax.random.split(key, 6)
        lim = 1.0 / (in_features * 9.0) ** 0.5
        self.weight = jax.random.uniform(
            kw_, (out_features, in_features, 3, 3), jnp.float32, -lim, lim)
        self.bias = (jax.random.uniform(kb_, (out_features,), jnp.float32, -lim, lim)
                     if use_bias else None)
        self.norm_type = norm_type
        self.activation = activation
        self.gamma = jax.random.uniform(kg_, (out_features,), jnp.float32, 0.5, 1.5)
        self.beta = 0.1 * jax.random.normal(kbe_, (out_features,), jnp.float32)
        self.running_mean = 0.1 * jax.random.normal(km_, (out_features,), jnp.float32)
        self.running_var = jax.random.uniform(kv_, (out_features,), jnp.float32, 0.5, 1.5)

    def __call__(self, x):
        return conv_block_pallas(
            x, self.weight, self.bias, norm_type=self.norm_type,
            gamma=self.gamma, beta=self.beta,
            running_mean=self.running_mean, running_var=self.running_var,
            activation=self.activation)


def _ref_conv_block(x, blk, eps=1e-5):
    # Reference uses the same bf16-operand / f32-accumulate numerics as the kernel.
    y = jax.lax.conv_general_dilated(
        x.astype(jnp.bfloat16), blk.weight.astype(jnp.bfloat16),
        window_strides=(1, 1), padding=((1, 1), (1, 1)),
        dimension_numbers=('NCHW', 'OIHW', 'NCHW'),
        preferred_element_type=jnp.float32)
    if blk.bias is not None:
        y = y + blk.bias[None, :, None, None]
    if blk.norm_type == 'bn':
        y = (y - blk.running_mean[None, :, None, None]) / jnp.sqrt(
            blk.running_var[None, :, None, None] + eps)
        y = y * blk.gamma[None, :, None, None] + blk.beta[None, :, None, None]
    if blk.activation:
        y = jnp.maximum(y, 0.0)
    return y


if __name__ == "__main__":
    key = jax.random.PRNGKey(0)
    kx, kp = jax.random.split(key)
    N, Cin, Cout, H, W = 2, 4, 32, 16, 16
    x = jax.random.normal(kx, (N, Cin, H, W), jnp.float32)

    blk = ConvBlock(Cin, Cout, kp, norm_type='bn', activation=True, use_bias=True)
    out = jax.block_until_ready(blk(x))

    ref = _ref_conv_block(x, blk)
    assert out.shape == (N, Cout, H, W), out.shape
    err = jnp.max(jnp.abs(out - ref))
    assert jnp.allclose(out, ref, atol=2e-3, rtol=2e-3), (
        f"mismatch vs reference, max|diff|={err}")

    print("KERNEL_OK")
</pallas_src>

<mosaic_0001>
module attributes {stable_mosaic.version = 11 : i64} {
  func.func @_conv_bn_act_kernel(%arg0: i32, %arg1: i32, %arg2: i32, %arg3: memref<1x16x18x4xbf16, #tpu.memory_space<vmem>>, %arg4: memref<1x2x18x4xbf16, #tpu.memory_space<vmem>>, %arg5: memref<36x128xbf16, #tpu.memory_space<vmem>>, %arg6: memref<1x128xf32, #tpu.memory_space<vmem>>, %arg7: memref<1x128xf32, #tpu.memory_space<vmem>>, %arg8: memref<1x256x128xf32, #tpu.memory_space<vmem>>, %arg9: memref<256x36xbf16, #tpu.memory_space<vmem>>) attributes {dimension_semantics = [#tpu.dimension_semantics<parallel>, #tpu.dimension_semantics<parallel>, #tpu.dimension_semantics<arbitrary>], iteration_bounds = array<i64: 2, 1, 1>, scalar_prefetch = 0 : i64, scratch_operands = 1 : i64, tpu.core_type = #tpu.core_type<tc>, window_params = [{transform_indices = @transform_0, window_bounds = array<i64: 1, 16, 18, 4>}, {transform_indices = @transform_1, window_bounds = array<i64: 1, 2, 18, 4>}, {transform_indices = @transform_2, window_bounds = array<i64: 36, 128>}, {transform_indices = @transform_3, window_bounds = array<i64: 1, 128>}, {transform_indices = @transform_4, window_bounds = array<i64: 1, 128>}, {transform_indices = @transform_5, window_bounds = array<i64: 1, 256, 128>}]} {
    %c0_i32 = arith.constant 0 : i32
    %0 = arith.cmpi eq, %arg2, %c0_i32 : i32
    %1 = arith.extui %0 : i1 to i32
    %c0_i32_0 = arith.constant 0 : i32
    %2 = arith.cmpi ne, %1, %c0_i32_0 : i32
    scf.if %2 {
      %c0_12 = arith.constant 0 : index
      %c0_13 = arith.constant 0 : index
      %c0_14 = arith.constant 0 : index
      %c0_15 = arith.constant 0 : index
      %17 = vector.load %arg3[%c0_12, %c0_13, %c0_14, %c0_15] : memref<1x16x18x4xbf16, #tpu.memory_space<vmem>>, vector<1x16x18x4xbf16>
      %18 = vector.shape_cast %17 : vector<1x16x18x4xbf16> to vector<16x18x4xbf16>
      %c0_16 = arith.constant 0 : index
      %c0_17 = arith.constant 0 : index
      %c0_18 = arith.constant 0 : index
      %c0_19 = arith.constant 0 : index
      %19 = vector.load %arg4[%c0_16, %c0_17, %c0_18, %c0_19] : memref<1x2x18x4xbf16, #tpu.memory_space<vmem>>, vector<1x2x18x4xbf16>
      %20 = vector.shape_cast %19 : vector<1x2x18x4xbf16> to vector<2x18x4xbf16>
      %21 = tpu.concatenate %18, %20 in 0 : vector<16x18x4xbf16>, vector<2x18x4xbf16> -> vector<18x18x4xbf16>
      %22 = vector.extract_strided_slice %21 {offsets = [0, 0, 0], sizes = [16, 16, 4], strides = [1, 1, 1]} : vector<18x18x4xbf16> to vector<16x16x4xbf16>
      %23 = vector.extract_strided_slice %21 {offsets = [0, 1, 0], sizes = [16, 16, 4], strides = [1, 1, 1]} : vector<18x18x4xbf16> to vector<16x16x4xbf16>
      %24 = vector.extract_strided_slice %21 {offsets = [0, 2, 0], sizes = [16, 16, 4], strides = [1, 1, 1]} : vector<18x18x4xbf16> to vector<16x16x4xbf16>
      %25 = vector.extract_strided_slice %21 {offsets = [1, 0, 0], sizes = [16, 16, 4], strides = [1, 1, 1]} : vector<18x18x4xbf16> to vector<16x16x4xbf16>
      %26 = vector.extract_strided_slice %21 {offsets = [1, 1, 0], sizes = [16, 16, 4], strides = [1, 1, 1]} : vector<18x18x4xbf16> to vector<16x16x4xbf16>
      %27 = vector.extract_strided_slice %21 {offsets = [1, 2, 0], sizes = [16, 16, 4], strides = [1, 1, 1]} : vector<18x18x4xbf16> to vector<16x16x4xbf16>
      %28 = vector.extract_strided_slice %21 {offsets = [2, 0, 0], sizes = [16, 16, 4], strides = [1, 1, 1]} : vector<18x18x4xbf16> to vector<16x16x4xbf16>
      %29 = vector.extract_strided_slice %21 {offsets = [2, 1, 0], sizes = [16, 16, 4], strides = [1, 1, 1]} : vector<18x18x4xbf16> to vector<16x16x4xbf16>
      %30 = vector.extract_strided_slice %21 {offsets = [2, 2, 0], sizes = [16, 16, 4], strides = [1, 1, 1]} : vector<18x18x4xbf16> to vector<16x16x4xbf16>
      %31 = tpu.concatenate %22, %23, %24, %25, %26, %27, %28, %29, %30 in 2 : vector<16x16x4xbf16>, vector<16x16x4xbf16>, vector<16x16x4xbf16>, vector<16x16x4xbf16>, vector<16x16x4xbf16>, vector<16x16x4xbf16>, vector<16x16x4xbf16>, vector<16x16x4xbf16>, vector<16x16x4xbf16> -> vector<16x16x36xbf16>
      %32 = vector.shape_cast %31 : vector<16x16x36xbf16> to vector<256x36xbf16>
      %c0_20 = arith.constant 0 : index
      %c0_21 = arith.constant 0 : index
      %33 = vector.load %arg9[%c0_20, %c0_21] : memref<256x36xbf16, #tpu.memory_space<vmem>>, vector<256x36xbf16>
      tpu.vector_store %arg9[%c0_20, %c0_21], %32 {strides = array<i32>} : memref<256x36xbf16, #tpu.memory_space<vmem>>, vector<256x36xbf16>,
    } else {
    }
    %c0 = arith.constant 0 : index
    %c0_1 = arith.constant 0 : index
    %3 = vector.load %arg9[%c0, %c0_1] : memref<256x36xbf16, #tpu.memory_space<vmem>>, vector<256x36xbf16>
    %c0_2 = arith.constant 0 : index
    %c0_3 = arith.constant 0 : index
    %4 = vector.load %arg5[%c0_2, %c0_3] : memref<36x128xbf16, #tpu.memory_space<vmem>>, vector<36x128xbf16>
    %cst = arith.constant dense<0.000000e+00> : vector<256x128xf32>
    %5 = tpu.matmul %3, %4, %cst {dimension_numbers = #tpu.dot_dimension_numbers<[1], [0], [0], [1], [0, 0, 1, 1], [], []>} : vector<256x36xbf16>, vector<36x128xbf16>, vector<256x128xf32> -> vector<256x128xf32>
    %c0_4 = arith.constant 0 : index
    %c0_5 = arith.constant 0 : index
    %6 = vector.load %arg6[%c0_4, %c0_5] : memref<1x128xf32, #tpu.memory_space<vmem>>, vector<1x128xf32>
    %7 = vector.broadcast %6 : vector<1x128xf32> to vector<256x128xf32>
    %8 = arith.mulf %5, %7 : vector<256x128xf32>
    %c0_6 = arith.constant 0 : index
    %c0_7 = arith.constant 0 : index
    %9 = vector.load %arg7[%c0_6, %c0_7] : memref<1x128xf32, #tpu.memory_space<vmem>>, vector<1x128xf32>
    %10 = vector.broadcast %9 : vector<1x128xf32> to vector<256x128xf32>
    %11 = arith.addf %8, %10 : vector<256x128xf32>
    %cst_8 = arith.constant 0.000000e+00 : f32
    %12 = vector.broadcast %cst_8 : f32 to vector<256x128xf32>
    %13 = arith.maximumf %11, %12 : vector<256x128xf32>
    %c0_9 = arith.constant 0 : index
    %c0_10 = arith.constant 0 : index
    %c0_11 = arith.constant 0 : index
    %14 = vector.load %arg8[%c0_9, %c0_10, %c0_11] : memref<1x256x128xf32, #tpu.memory_space<vmem>>, vector<1x256x128xf32>
    %15 = vector.shape_cast %14 : vector<1x256x128xf32> to vector<256x128xf32>
    %16 = vector.shape_cast %13 : vector<256x128xf32> to vector<1x256x128xf32>
    tpu.vector_store %arg8[%c0_9, %c0_10, %c0_11], %16 {strides = array<i32>} : memref<1x256x128xf32, #tpu.memory_space<vmem>>, vector<1x256x128xf32>,
    return
  }
  func.func @transform_0(%arg0: i32, %arg1: i32, %arg2: i32) -> (i32, i32, i32, i32) {
    %c0_i32 = arith.constant 0 : i32
    %c0_i32_0 = arith.constant 0 : i32
    %c0_i32_1 = arith.constant 0 : i32
    return %arg0, %arg1, %c0_i32, %c0_i32_0 : i32, i32, i32, i32
  }
  func.func @transform_1(%arg0: i32, %arg1: i32, %arg2: i32) -> (i32, i32, i32, i32) {
    %c1_i32 = arith.constant 1 : i32
    %0 = arith.addi %arg1, %c1_i32 : i32
    %c8_i32 = arith.constant 8 : i32
    %1 = arith.muli %0, %c8_i32 : i32
    %c0_i32 = arith.constant 0 : i32
    %c0_i32_0 = arith.constant 0 : i32
    %c0_i32_1 = arith.constant 0 : i32
    return %arg0, %1, %c0_i32, %c0_i32_0 : i32, i32, i32, i32
  }
  func.func @transform_2(%arg0: i32, %arg1: i32, %arg2: i32) -> (i32, i32) {
    %c0_i32 = arith.constant 0 : i32
    %c0_i32_0 = arith.constant 0 : i32
    return %c0_i32, %arg2 : i32, i32
  }
  func.func @transform_3(%arg0: i32, %arg1: i32, %arg2: i32) -> (i32, i32) {
    %c0_i32 = arith.constant 0 : i32
    %c0_i32_0 = arith.constant 0 : i32
    return %c0_i32, %arg2 : i32, i32
  }
  func.func @transform_4(%arg0: i32, %arg1: i32, %arg2: i32) -> (i32, i32) {
    %c0_i32 = arith.constant 0 : i32
    %c0_i32_0 = arith.constant 0 : i32
    return %c0_i32, %arg2 : i32, i32
  }
  func.func @transform_5(%arg0: i32, %arg1: i32, %arg2: i32) -> (i32, i32, i32) {
    %c0_i32 = arith.constant 0 : i32
    return %arg0, %arg1, %arg2 : i32, i32, i32
  }
}

</mosaic_0001>

<llo_original>
// kernel: tpu_custom_call.1
$region0: #{tpu_custom_call.1}
  #allocation0 [shape = 'u32[]', space=smem, size = 0x4, offset = 0x4, fixed_abs, tag = 'smem constant byte address 0x4 - core index']
  #allocation1 [shape = 'u32[144,128]{1,0:T(1,128)}', space=vmem, size = 0x12000, scoped, tag = 'internal scratch']
  #allocation2 [shape = 'bf16[256,36]{1,0:T(16,128)(2,1)}', space=vmem, size = 0x10000, scoped, tag = 'scratch operand']
  %s0 = inlined_call_operand.vmem [shape: bf16[2,18,18,4], index: 0, kind: input, shape index: {}]
  %s1 = inlined_call_operand.vmem [shape: bf16[2,18,18,4], index: 1, kind: input, shape index: {}]
  %s2 = inlined_call_operand.vmem [shape: bf16[36,128], index: 2, kind: input, shape index: {}]
  %s3 = inlined_call_operand.vmem [shape: f32[1,128], index: 3, kind: input, shape index: {}]
  %s4 = inlined_call_operand.vmem [shape: f32[1,128], index: 4, kind: input, shape index: {}]
  %s5 = inlined_call_operand.hbm [shape: f32[2,256,128], index: 5, kind: output, shape index: {}]
  %s6 = sld [smem:[#allocation0]]
  $region57: #{tpu_custom_call.1} parent=0
    _
  %s8 = ssub.s32 1, %s6
  %s9 = scalar_select 0, %s8, %s6
  $region1: #{tpu_custom_call.1} parent=0
    #allocation3 [shape = 'u8[262144]{0}', space=vmem, size = 0x40000, scoped, tag = 'output window, operand 0']
    #allocation4 [shape = 's32[2]{0}', space=sflag, size = 0x8, scoped, tag = 'scoped memory for tpu_custom_call.1']
    %10 = vsyncpa [#allocation4], 0
    %s11 = scalar_lea.sflag [#allocation4], 1
    %12 = vsyncpa %s11, 0
    loop: start=0, step=1, limit=4
    $region2: #{tpu_custom_call.1} parent=1 // loop_pre_header
      _
    $region3: #{tpu_custom_call.1} parent=1 // loop_header
      %s14 = sphi 0, %s18
      %p15 = scmp.ge.s32.totalorder %s14, 4
      %s21 = sphi 0, %s40
      %s22 = sphi 0, %s36
      %s23 = sphi 0, %s32
      %s24 = sphi 0, %s21
      %s25 = sphi 0, %s22
      %s26 = sphi 0, %s23
      %s27 = sphi 0, %s24
      %s28 = sphi 0, %s25
      %s29 = sphi 0, %s26
      %s45 = sphi 0, %s47
      %s48 = sphi 0, %s45
      %s49 = sphi 0, %s48
      %s65 = sphi 0, %s49
      %s77 = sphi 0, %s79
      %s80 = sphi 0, %s77
      %s81 = sphi 0, %s80
      %s97 = sphi 0, %s81
      %s103 = sphi 0, %s105
      %s106 = sphi 0, %s103
      %s107 = sphi 0, %s106
      %s123 = sphi 0, %s107
      %s129 = sphi 0, %s131
      %s132 = sphi 0, %s129
      %s133 = sphi 0, %s132
      %s149 = sphi 0, %s133
      %s155 = sphi 0, %s157
      %s158 = sphi 0, %s155
      %s159 = sphi 0, %s158
      %s175 = sphi 0, %s159
      %s185 = sphi 0, %s187
      %s188 = sphi 0, %s185
      %s189 = sphi 0, %s188
      %s205 = sphi 0, %s189
    $region4: #{tpu_custom_call.1} parent=1 // loop_header_branch
      %17 = sbr.rel (%p15) target = $region8
    $region5: #{tpu_custom_call.1} parent=1 // loop_body
      %s19 = ssub.s32 %s14, 1
      %s20 = ssub.s32 %s14, 2
      %s30 = sadd.s32 1, %s23
      %p31 = scmp.ge.s32.totalorder %s30, 1
      %s32 = scalar_select %p31, 0, %s30
      %s33 = sadd.s32 1, %s22
      %s34 = scalar_select %p31, %s33, %s22
      %p35 = scmp.ge.s32.totalorder %s34, 1
      %s36 = scalar_select %p35, 0, %s34
      %s37 = sadd.s32 1, %s21
      %s38 = scalar_select %p35, %s37, %s21
      %p39 = scmp.ge.s32.totalorder %s38, 2
      %s40 = scalar_select %p39, 0, %s38
      %s41 = ssub.s32 %s21, %s40
      %s42 = ssub.s32 %s22, %s36
      %s43 = sor.u32 %s41, %s42
      %p44 = scmp.eq.s32.totalorder %s43, 0
      %s46 = sadd.s32 %s45, 1
      %s47 = scalar_select %p44, %s45, %s46
      %p50 = pneg %p44
      %p51 = scmp.eq.s32.totalorder %s14, 1
      %p52 = por %p50, %p51
      %p53 = scmp.ne.s32.totalorder %s45, %s48
      %p54 = scmp.eq.s32.totalorder %s14, 0
      %p55 = por %p53, %p54
      %p56 = scmp.ne.s32.totalorder %s45, %s48
      %p57 = scmp.eq.s32.totalorder %s19, 1
      %p58 = por %p56, %p57
      %p59 = scmp.ne.s32.totalorder %s48, %s49
      %p60 = scmp.eq.s32.totalorder %s19, 0
      %p61 = por %p59, %p60
      %p62 = scmp.ne.s32.totalorder %s48, %s49
      %p63 = scmp.eq.s32.totalorder %s20, 1
      %p64 = por %p62, %p63
      %p66 = scmp.ne.s32.totalorder %s49, %s65
      %p67 = scmp.eq.s32.totalorder %s20, 0
      %p68 = por %p66, %p67
      %s69 = sadd.s32 %s22, 1
      %s70 = smul.u32 %s69, 8
      %s71 = sadd.s32 %s36, 1
      %s72 = smul.u32 %s71, 8
      %s73 = ssub.s32 %s21, %s40
      %s74 = ssub.s32 %s70, %s72
      %s75 = sor.u32 %s73, %s74
      %p76 = scmp.eq.s32.totalorder %s75, 0
      %s78 = sadd.s32 %s77, 1
      %s79 = scalar_select %p76, %s77, %s78
      %p82 = pneg %p76
      %p83 = scmp.eq.s32.totalorder %s14, 1
      %p84 = por %p82, %p83
      %p85 = scmp.ne.s32.totalorder %s77, %s80
      %p86 = scmp.eq.s32.totalorder %s14, 0
      %p87 = por %p85, %p86
      %p88 = scmp.ne.s32.totalorder %s77, %s80
      %p89 = scmp.eq.s32.totalorder %s19, 1
      %p90 = por %p88, %p89
      %p91 = scmp.ne.s32.totalorder %s80, %s81
      %p92 = scmp.eq.s32.totalorder %s19, 0
      %p93 = por %p91, %p92
      %p94 = scmp.ne.s32.totalorder %s80, %s81
      %p95 = scmp.eq.s32.totalorder %s20, 1
      %p96 = por %p94, %p95
      %p98 = scmp.ne.s32.totalorder %s81, %s97
      %p99 = scmp.eq.s32.totalorder %s20, 0
      %p100 = por %p98, %p99
      %s101 = ssub.s32 %s23, %s32
      %p102 = scmp.eq.s32.totalorder %s101, 0
      %s104 = sadd.s32 %s103, 1
      %s105 = scalar_select %p102, %s103, %s104
      %p108 = pneg %p102
      %p109 = scmp.eq.s32.totalorder %s14, 1
      %p110 = por %p108, %p109
      %p111 = scmp.ne.s32.totalorder %s103, %s106
      %p112 = scmp.eq.s32.totalorder %s14, 0
      %p113 = por %p111, %p112
      %p114 = scmp.ne.s32.totalorder %s103, %s106
      %p115 = scmp.eq.s32.totalorder %s19, 1
      %p116 = por %p114, %p115
      %p117 = scmp.ne.s32.totalorder %s106, %s107
      %p118 = scmp.eq.s32.totalorder %s19, 0
      %p119 = por %p117, %p118
      %p120 = scmp.ne.s32.totalorder %s106, %s107
      %p121 = scmp.eq.s32.totalorder %s20, 1
      %p122 = por %p120, %p121
      %p124 = scmp.ne.s32.totalorder %s107, %s123
      %p125 = scmp.eq.s32.totalorder %s20, 0
      %p126 = por %p124, %p125
      %s127 = ssub.s32 %s23, %s32
      %p128 = scmp.eq.s32.totalorder %s127, 0
      %s130 = sadd.s32 %s129, 1
      %s131 = scalar_select %p128, %s129, %s130
      %p134 = pneg %p128
      %p135 = scmp.eq.s32.totalorder %s14, 1
      %p136 = por %p134, %p135
      %p137 = scmp.ne.s32.totalorder %s129, %s132
      %p138 = scmp.eq.s32.totalorder %s14, 0
      %p139 = por %p137, %p138
      %p140 = scmp.ne.s32.totalorder %s129, %s132
      %p141 = scmp.eq.s32.totalorder %s19, 1
      %p142 = por %p140, %p141
      %p143 = scmp.ne.s32.totalorder %s132, %s133
      %p144 = scmp.eq.s32.totalorder %s19, 0
      %p145 = por %p143, %p144
      %p146 = scmp.ne.s32.totalorder %s132, %s133
      %p147 = scmp.eq.s32.totalorder %s20, 1
      %p148 = por %p146, %p147
      %p150 = scmp.ne.s32.totalorder %s133, %s149
      %p151 = scmp.eq.s32.totalorder %s20, 0
      %p152 = por %p150, %p151
      %s153 = ssub.s32 %s23, %s32
      %p154 = scmp.eq.s32.totalorder %s153, 0
      %s156 = sadd.s32 %s155, 1
      %s157 = scalar_select %p154, %s155, %s156
      %p160 = pneg %p154
      %p161 = scmp.eq.s32.totalorder %s14, 1
      %p162 = por %p160, %p161
      %p163 = scmp.ne.s32.totalorder %s155, %s158
      %p164 = scmp.eq.s32.totalorder %s14, 0
      %p165 = por %p163, %p164
      %p166 = scmp.ne.s32.totalorder %s155, %s158
      %p167 = scmp.eq.s32.totalorder %s19, 1
      %p168 = por %p166, %p167
      %p169 = scmp.ne.s32.totalorder %s158, %s159
      %p170 = scmp.eq.s32.totalorder %s19, 0
      %p171 = por %p169, %p170
      %p172 = scmp.ne.s32.totalorder %s158, %s159
      %p173 = scmp.eq.s32.totalorder %s20, 1
      %p174 = por %p172, %p173
      %p176 = scmp.ne.s32.totalorder %s159, %s175
      %p177 = scmp.eq.s32.totalorder %s20, 0
      %p178 = por %p176, %p177
      %s179 = ssub.s32 %s21, %s40
      %s180 = ssub.s32 %s22, %s36
      %s181 = sor.u32 %s179, %s180
      %s182 = ssub.s32 %s23, %s32
      %s183 = sor.u32 %s181, %s182
      %p184 = scmp.eq.s32.totalorder %s183, 0
      %s186 = sadd.s32 %s185, 1
      %s187 = scalar_select %p184, %s185, %s186
      %p190 = pneg %p184
      %p191 = scmp.eq.s32.totalorder %s14, 1
      %p192 = por %p190, %p191
      %p193 = scmp.ne.s32.totalorder %s185, %s188
      %p194 = scmp.eq.s32.totalorder %s14, 0
      %p195 = por %p193, %p194
      %p196 = scmp.ne.s32.totalorder %s185, %s188
      %p197 = scmp.eq.s32.totalorder %s19, 1
      %p198 = por %p196, %p197
      %p199 = scmp.ne.s32.totalorder %s188, %s189
      %p200 = scmp.eq.s32.totalorder %s19, 0
      %p201 = por %p199, %p200
      %p202 = scmp.ne.s32.totalorder %s188, %s189
      %p203 = scmp.eq.s32.totalorder %s20, 1
      %p204 = por %p202, %p203
      %p206 = scmp.ne.s32.totalorder %s189, %s205
      %p207 = scmp.eq.s32.totalorder %s20, 0
      %p208 = por %p206, %p207
      %p209 = scmp.le.s32.totalorder 1, %s14
      %p210 = scmp.lt.s32.totalorder %s14, 3
      %p211 = pnand %p209, %p210
      %p212 = pneg %p211
      // Predicated region
      $region9: #{tpu_custom_call.1} parent=5 // pred_check
        _
      $region10: #{tpu_custom_call.1} parent=5 // pred_check_branch
        %214 = sbr.rel (%p211) target = $region12
      $region11: #{tpu_custom_call.1} parent=5 // pred_region
        %s215 = ssub.s32 %s14, 1
        // Predicated region
        $region13: #{tpu_custom_call.1} parent=11 // pred_check
          %p216 = pneg %p119
        $region14: #{tpu_custom_call.1} parent=11 // pred_check_branch
          %218 = sbr.rel (%p216) target = $region16
        $region15: #{tpu_custom_call.1} parent=11 // pred_region
          %p219 = scmp.lt.s32.totalorder %s26, 0
          %s220 = scalar_select %p219, %s26, 0
          %s221 = smul.addr %s220, 4
          %s222 = scalar_lea.vmem %s2, %s221
        $region16: #{tpu_custom_call.1} parent=11 // pred_fallthru
          _
        // Predicated region
        $region17: #{tpu_custom_call.1} parent=11 // pred_check
          %p223 = pneg %p145
        $region18: #{tpu_custom_call.1} parent=11 // pred_check_branch
          %225 = sbr.rel (%p223) target = $region20
        $region19: #{tpu_custom_call.1} parent=11 // pred_region
          %p226 = scmp.lt.s32.totalorder %s26, 0
          %s227 = scalar_select %p226, %s26, 0
          %s228 = scalar_lea.vmem %s3, %s227
        $region20: #{tpu_custom_call.1} parent=11 // pred_fallthru
          _
        // Predicated region
        $region21: #{tpu_custom_call.1} parent=11 // pred_check
          %p229 = pneg %p171
        $region22: #{tpu_custom_call.1} parent=11 // pred_check_branch
          %231 = sbr.rel (%p229) target = $region24
        $region23: #{tpu_custom_call.1} parent=11 // pred_region
          %p232 = scmp.lt.s32.totalorder %s26, 0
          %s233 = scalar_select %p232, %s26, 0
          %s234 = scalar_lea.vmem %s4, %s233
        $region24: #{tpu_custom_call.1} parent=11 // pred_fallthru
          _
      $region12: #{tpu_custom_call.1} parent=5 // pred_fallthru
        _
      %p235 = scmp.lt.s32.totalorder %s14, 2
      // Predicated region
      $region25: #{tpu_custom_call.1} parent=5 // pred_check
        %p236 = pneg %p235
      $region26: #{tpu_custom_call.1} parent=5 // pred_check_branch
        %238 = sbr.rel (%p236) target = $region28
      $region27: #{tpu_custom_call.1} parent=5 // pred_region
        // Predicated region
        $region29: #{tpu_custom_call.1} parent=27 // pred_check
          %p239 = pneg %p55
        $region30: #{tpu_custom_call.1} parent=27 // pred_check_branch
          %241 = sbr.rel (%p239) target = $region32
        $region31: #{tpu_custom_call.1} parent=27 // pred_region
          %s242 = smul.u32 16, %s22
          %s243 = ssub.s32 18, %s242
          %p244 = scmp.lt.s32.totalorder %s243, 16
          %s245 = scalar_select %p244, %s243, 16
          %s246 = smul.u32 64, %s245
          %s247 = smul.u32 %s246, 3
          %p248 = scmp.lt.s32.totalorder %s21, 1
          %s249 = scalar_select %p248, %s21, 1
          %p250 = scmp.lt.s32.totalorder %s242, 17
          %s251 = scalar_select %p250, %s242, 17
          %s252 = smul.addr %s251, 3
          %s253 = smul.addr %s249, 54
          %s254 = sadd.s32 %s252, %s253
          %s255 = smul.addr %s254, 4
          %s256 = scalar_lea.vmem %s0, %s255
          %s257 = smul.u32 16, %s22
          %s258 = ssub.s32 18, %s257
          %p259 = scmp.lt.s32.totalorder %s258, 16
          %s260 = scalar_select %p259, %s258, 16
          %s261 = smul.u32 64, %s260
          %s262 = smul.u32 %s261, 3
        $region32: #{tpu_custom_call.1} parent=27 // pred_fallthru
          _
        // Predicated region
        $region33: #{tpu_custom_call.1} parent=27 // pred_check
          %p263 = pneg %p87
        $region34: #{tpu_custom_call.1} parent=27 // pred_check_branch
          %265 = sbr.rel (%p263) target = $region36
        $region35: #{tpu_custom_call.1} parent=27 // pred_region
          %s266 = sadd.s32 %s22, 1
          %s267 = smul.u32 %s266, 8
          %s268 = smul.u32 2, %s267
          %p269 = scmp.lt.s32.totalorder %s21, 1
          %s270 = scalar_select %p269, %s21, 1
          %p271 = scmp.lt.s32.totalorder %s268, 17
          %s272 = scalar_select %p271, %s268, 17
          %s273 = smul.addr %s272, 3
          %s274 = smul.addr %s270, 54
          %s275 = sadd.s32 %s273, %s274
          %s276 = smul.addr %s275, 4
          %s277 = scalar_lea.vmem %s1, %s276
          %s278 = sadd.s32 %s22, 1
          %s279 = smul.u32 %s278, 8
          %s280 = smul.u32 2, %s279
        $region36: #{tpu_custom_call.1} parent=27 // pred_fallthru
          _
      $region28: #{tpu_custom_call.1} parent=5 // pred_fallthru
        _
      %p281 = scmp.le.s32.totalorder 1, %s14
      %p282 = scmp.lt.s32.totalorder %s14, 3
      %p283 = pnand %p281, %p282
      %p284 = pneg %p283
      // Predicated region
      $region37: #{tpu_custom_call.1} parent=5 // pred_check
        _
      $region38: #{tpu_custom_call.1} parent=5 // pred_check_branch
        %286 = sbr.rel (%p283) target = $region40
      $region39: #{tpu_custom_call.1} parent=5 // pred_region
        %s287 = ssub.s32 %s14, 1
        %s288 = smul.u32 16, %s25
        %s289 = ssub.s32 18, %s288
        %p290 = scmp.lt.s32.totalorder %s289, 16
        %s291 = scalar_select %p290, %s289, 16
        %s292 = smul.u32 64, %s291
        %s293 = smul.u32 %s292, 3
        %p294 = scmp.lt.s32.totalorder %s24, 1
        %s295 = scalar_select %p294, %s24, 1
        %p296 = scmp.lt.s32.totalorder %s288, 17
        %s297 = scalar_select %p296, %s288, 17
        %s298 = smul.addr %s297, 3
        %s299 = smul.addr %s295, 54
        %s300 = sadd.s32 %s298, %s299
        %s301 = smul.addr %s300, 4
        %s302 = scalar_lea.vmem %s0, %s301
        %p303 = pneg %p61
        %p304 = pneg %p58
        %s305 = sadd.s32 %s25, 1
        %s306 = smul.u32 %s305, 8
        %s307 = smul.u32 2, %s306
        %p308 = scmp.lt.s32.totalorder %s24, 1
        %s309 = scalar_select %p308, %s24, 1
        %p310 = scmp.lt.s32.totalorder %s307, 17
        %s311 = scalar_select %p310, %s307, 17
        %s312 = smul.addr %s311, 3
        %s313 = smul.addr %s309, 54
        %s314 = sadd.s32 %s312, %s313
        %s315 = smul.addr %s314, 4
        %s316 = scalar_lea.vmem %s1, %s315
        %p317 = pneg %p93
        %p318 = pneg %p90
        %p319 = scmp.lt.s32.totalorder %s26, 0
        %s320 = scalar_select %p319, %s26, 0
        %s321 = smul.addr %s320, 4
        %s322 = scalar_lea.vmem %s2, %s321
        %p323 = pneg %p119
        %p324 = pneg %p116
        %p325 = scmp.lt.s32.totalorder %s26, 0
        %s326 = scalar_select %p325, %s26, 0
        %s327 = scalar_lea.vmem %s3, %s326
        %p328 = pneg %p145
        %p329 = pneg %p142
        %p330 = scmp.lt.s32.totalorder %s26, 0
        %s331 = scalar_select %p330, %s26, 0
        %s332 = scalar_lea.vmem %s4, %s331
        %p333 = pneg %p171
        %p334 = pneg %p168
        %p335 = pneg %p201
        %p336 = pneg %p198
        %s337 = sand.u32 %s188, 1
        %s338 = scalar_lea.sflag [#allocation4], %s337
        %s339 = sand.u32 %s188, 1
        %s340 = smul.addr %s339, 256
        %s341 = scalar_lea.vmem [#allocation3], %s340
        %s342 = smul.u32 16, %s25
        %s343 = ssub.s32 18, %s342
        %p344 = scmp.lt.s32.totalorder %s343, 16
        %s345 = scalar_select %p344, %s343, 16
        %s346 = smul.u32 64, %s345
        %s347 = smul.u32 %s346, 3
        %p348 = scmp.lt.s32.totalorder %s24, 1
        %s349 = scalar_select %p348, %s24, 1
        %p350 = scmp.lt.s32.totalorder %s342, 17
        %s351 = scalar_select %p350, %s342, 17
        %s352 = smul.addr %s351, 3
        %s353 = smul.addr %s349, 54
        %s354 = sadd.s32 %s352, %s353
        %s355 = smul.addr %s354, 4
        %s356 = scalar_lea.vmem %s0, %s355
        %s357 = smul.u32 16, %s25
        %s358 = ssub.s32 18, %s357
        %p359 = scmp.lt.s32.totalorder %s358, 16
        %s360 = scalar_select %p359, %s358, 16
        %s361 = smul.u32 64, %s360
        %s362 = smul.u32 %s361, 3
        %s363 = sadd.s32 %s25, 1
        %s364 = smul.u32 %s363, 8
        %s365 = smul.u32 2, %s364
        %p366 = scmp.lt.s32.totalorder %s24, 1
        %s367 = scalar_select %p366, %s24, 1
        %p368 = scmp.lt.s32.totalorder %s365, 17
        %s369 = scalar_select %p368, %s365, 17
        %s370 = smul.addr %s369, 3
        %s371 = smul.addr %s367, 54
        %s372 = sadd.s32 %s370, %s371
        %s373 = smul.addr %s372, 4
        %s374 = scalar_lea.vmem %s1, %s373
        %s375 = sadd.s32 %s25, 1
        %s376 = smul.u32 %s375, 8
        %s377 = smul.u32 2, %s376
        %p378 = scmp.lt.s32.totalorder %s26, 0
        %s379 = scalar_select %p378, %s26, 0
        %s380 = smul.addr %s379, 4
        %s381 = scalar_lea.vmem %s2, %s380
        %p382 = scmp.lt.s32.totalorder %s26, 0
        %s383 = scalar_select %p382, %s26, 0
        %s384 = scalar_lea.vmem %s3, %s383
        %p385 = scmp.lt.s32.totalorder %s26, 0
        %s386 = scalar_select %p385, %s26, 0
        %s387 = scalar_lea.vmem %s4, %s386
        %s388 = smul.u32 32, %s25
        %p390 = scmp.eq.s32.totalorder %s26, 0
        // Predicated region
        $region41: #{tpu_custom_call.1} parent=39 // pred_check
          %p391 = pneg %p390
        $region42: #{tpu_custom_call.1} parent=39 // pred_check_branch
          %393 = sbr.rel (%p391) target = $region44
        $region43: #{tpu_custom_call.1} parent=39 // pred_region
          %v394 = vld [vmem:[%s356] sm:$0xf]
          %v395 = vld [vmem:[%s356 + $0x4] sm:$0xf]
          %v396 = vld [vmem:[%s356 + $0x8] sm:$0x1]
          %v397 = vld [vmem:[%s356 + $0xc] sm:$0xf]
          %v398 = vld [vmem:[%s356 + $0x10] sm:$0xf]
          %v399 = vld [vmem:[%s356 + $0x14] sm:$0x1]
          %v400 = vld [vmem:[%s356 + $0x18] sm:$0xf]
          %v401 = vld [vmem:[%s356 + $0x1c] sm:$0xf]
          %v402 = vld [vmem:[%s356 + $0x20] sm:$0x1]
          %v403 = vld [vmem:[%s356 + $0x24] sm:$0xf]
          %v404 = vld [vmem:[%s356 + $0x28] sm:$0xf]
          %v405 = vld [vmem:[%s356 + $0x2c] sm:$0x1]
          %v406 = vld [vmem:[%s356 + $0x30] sm:$0xf]
          %v407 = vld [vmem:[%s356 + $0x34] sm:$0xf]
          %v408 = vld [vmem:[%s356 + $0x38] sm:$0x1]
          %v409 = vld [vmem:[%s356 + $0x3c] sm:$0xf]
          %v410 = vld [vmem:[%s356 + $0x40] sm:$0xf]
          %v411 = vld [vmem:[%s356 + $0x44] sm:$0x1]
          %v412 = vld [vmem:[%s356 + $0x48] sm:$0xf]
          %v413 = vld [vmem:[%s356 + $0x4c] sm:$0xf]
          %v414 = vld [vmem:[%s356 + $0x50] sm:$0x1]
          %v415 = vld [vmem:[%s356 + $0x54] sm:$0xf]
          %v416 = vld [vmem:[%s356 + $0x58] sm:$0xf]
          %v417 = vld [vmem:[%s356 + $0x5c] sm:$0x1]
          %v418 = vld [vmem:[%s356 + $0x60] sm:$0xf]
          %v419 = vld [vmem:[%s356 + $0x64] sm:$0xf]
          %v420 = vld [vmem:[%s356 + $0x68] sm:$0x1]
          %v421 = vld [vmem:[%s356 + $0x6c] sm:$0xf]
          %v422 = vld [vmem:[%s356 + $0x70] sm:$0xf]
          %v423 = vld [vmem:[%s356 + $0x74] sm:$0x1]
          %v424 = vld [vmem:[%s356 + $0x78] sm:$0xf]
          %v425 = vld [vmem:[%s356 + $0x7c] sm:$0xf]
          %v426 = vld [vmem:[%s356 + $0x80] sm:$0x1]
          %v427 = vld [vmem:[%s356 + $0x84] sm:$0xf]
          %v428 = vld [vmem:[%s356 + $0x88] sm:$0xf]
          %v429 = vld [vmem:[%s356 + $0x8c] sm:$0x1]
          %v430 = vld [vmem:[%s356 + $0x90] sm:$0xf]
          %v431 = vld [vmem:[%s356 + $0x94] sm:$0xf]
          %v432 = vld [vmem:[%s356 + $0x98] sm:$0x1]
          %v433 = vld [vmem:[%s356 + $0x9c] sm:$0xf]
          %v434 = vld [vmem:[%s356 + $0xa0] sm:$0xf]
          %v435 = vld [vmem:[%s356 + $0xa4] sm:$0x1]
          %v436 = vld [vmem:[%s356 + $0xa8] sm:$0xf]
          %v437 = vld [vmem:[%s356 + $0xac] sm:$0xf]
          %v438 = vld [vmem:[%s356 + $0xb0] sm:$0x1]
          %v439 = vld [vmem:[%s356 + $0xb4] sm:$0xf]
          %v440 = vld [vmem:[%s356 + $0xb8] sm:$0xf]
          %v441 = vld [vmem:[%s356 + $0xbc] sm:$0x1]
          %v442 = vld [vmem:[%s374] sm:$0xf]
          %v443 = vld [vmem:[%s374 + $0x4] sm:$0xf]
          %v444 = vld [vmem:[%s374 + $0x8] sm:$0x1]
          %v445 = vld [vmem:[%s374 + $0xc] sm:$0xf]
          %v446 = vld [vmem:[%s374 + $0x10] sm:$0xf]
          %v447 = vld [vmem:[%s374 + $0x14] sm:$0x1]
          %v480 = vunpack.c.l.b16 %v394
          %v481 = vunpack.c.l.b16 %v395
          %v482 = vunpack.c.l.b16 %v397
          %v483 = vunpack.c.l.b16 %v398
          %v484 = vunpack.c.l.b16 %v400
          %v485 = vunpack.c.l.b16 %v401
          %v486 = vunpack.c.l.b16 %v403
          %v487 = vunpack.c.l.b16 %v404
          %v488 = vunpack.c.l.b16 %v406
          %v489 = vunpack.c.l.b16 %v407
          %v490 = vunpack.c.l.b16 %v409
          %v491 = vunpack.c.l.b16 %v410
          %v492 = vunpack.c.l.b16 %v412
          %v493 = vunpack.c.l.b16 %v413
          %v494 = vunpack.c.l.b16 %v415
          %v495 = vunpack.c.l.b16 %v416
          %v496 = vunpack.c.l.b16 %v418
          %v497 = vunpack.c.l.b16 %v419
          %v498 = vunpack.c.l.b16 %v421
          %v499 = vunpack.c.l.b16 %v422
          %v500 = vunpack.c.l.b16 %v424
          %v501 = vunpack.c.l.b16 %v425
          %v502 = vunpack.c.l.b16 %v427
          %v503 = vunpack.c.l.b16 %v428
          %v504 = vunpack.c.l.b16 %v430
          %v505 = vunpack.c.l.b16 %v431
          %v506 = vunpack.c.l.b16 %v433
          %v507 = vunpack.c.l.b16 %v434
          %v508 = vunpack.c.l.b16 %v436
          %v509 = vunpack.c.l.b16 %v437
          %v510 = vunpack.c.l.b16 %v439
          %v511 = vunpack.c.l.b16 %v440
          %v512 = vpack.c.b16 %v481, %v480
          %v513 = vpack.c.b16 %v483, %v482
          %v514 = vpack.c.b16 %v485, %v484
          %v515 = vpack.c.b16 %v487, %v486
          %v516 = vpack.c.b16 %v489, %v488
          %v517 = vpack.c.b16 %v491, %v490
          %v518 = vpack.c.b16 %v493, %v492
          %v519 = vpack.c.b16 %v495, %v494
          %v520 = vpack.c.b16 %v497, %v496
          %v521 = vpack.c.b16 %v499, %v498
          %v522 = vpack.c.b16 %v501, %v500
          %v523 = vpack.c.b16 %v503, %v502
          %v524 = vpack.c.b16 %v505, %v504
          %v525 = vpack.c.b16 %v507, %v506
          %v526 = vpack.c.b16 %v509, %v508
          %v527 = vpack.c.b16 %v511, %v510
          %v544 = vunpack.c.l.b16 %v396
          %v545 = vunpack.c.l.b16 %v399
          %v546 = vunpack.c.l.b16 %v402
          %v547 = vunpack.c.l.b16 %v405
          %v548 = vunpack.c.l.b16 %v408
          %v549 = vunpack.c.l.b16 %v411
          %v550 = vunpack.c.l.b16 %v414
          %v551 = vunpack.c.l.b16 %v417
          %v552 = vunpack.c.l.b16 %v420
          %v553 = vunpack.c.l.b16 %v423
          %v554 = vunpack.c.l.b16 %v426
          %v555 = vunpack.c.l.b16 %v429
          %v556 = vunpack.c.l.b16 %v432
          %v557 = vunpack.c.l.b16 %v435
          %v558 = vunpack.c.l.b16 %v438
          %v559 = vunpack.c.l.b16 %v441
          %v560 = vpack.c.b16 %v544, %v544
          %v561 = vpack.c.b16 %v545, %v545
          %v562 = vpack.c.b16 %v546, %v546
          %v563 = vpack.c.b16 %v547, %v547
          %v564 = vpack.c.b16 %v548, %v548
          %v565 = vpack.c.b16 %v549, %v549
          %v566 = vpack.c.b16 %v550, %v550
          %v567 = vpack.c.b16 %v551, %v551
          %v568 = vpack.c.b16 %v552, %v552
          %v569 = vpack.c.b16 %v553, %v553
          %v570 = vpack.c.b16 %v554, %v554
          %v571 = vpack.c.b16 %v555, %v555
          %v572 = vpack.c.b16 %v556, %v556
          %v573 = vpack.c.b16 %v557, %v557
          %v574 = vpack.c.b16 %v558, %v558
          %v575 = vpack.c.b16 %v559, %v559
          %vm576 = vsmask.f32 7424
          %v578 = vshrl.u32 %v512, 16
          %v580 = vshll.u32 %v512, 16
          %v582 = vrot.slane %v580, 1
          %v583 = vor.u32 %v578, %v582
          %v585 = vshll.u32 %v560, 16
          %v587 = vrot.slane %v585, 1
          %v588 = vsel %vm576, %v583, %v587
          %v590 = vshrl.u32 %v513, 16
          %v592 = vshll.u32 %v513, 16
          %v594 = vrot.slane %v592, 1
          %v595 = vor.u32 %v590, %v594
          %v597 = vshll.u32 %v561, 16
          %v599 = vrot.slane %v597, 1
          %v600 = vsel %vm576, %v595, %v599
          %v602 = vshrl.u32 %v514, 16
          %v604 = vshll.u32 %v514, 16
          %v606 = vrot.slane %v604, 1
          %v607 = vor.u32 %v602, %v606
          %v609 = vshll.u32 %v562, 16
          %v611 = vrot.slane %v609, 1
          %v612 = vsel %vm576, %v607, %v611
          %v614 = vshrl.u32 %v515, 16
          %v616 = vshll.u32 %v515, 16
          %v618 = vrot.slane %v616, 1
          %v619 = vor.u32 %v614, %v618
          %v621 = vshll.u32 %v563, 16
          %v623 = vrot.slane %v621, 1
          %v624 = vsel %vm576, %v619, %v623
          %v626 = vshrl.u32 %v516, 16
          %v628 = vshll.u32 %v516, 16
          %v630 = vrot.slane %v628, 1
          %v631 = vor.u32 %v626, %v630
          %v633 = vshll.u32 %v564, 16
          %v635 = vrot.slane %v633, 1
          %v636 = vsel %vm576, %v631, %v635
          %v638 = vshrl.u32 %v517, 16
          %v640 = vshll.u32 %v517, 16
          %v642 = vrot.slane %v640, 1
          %v643 = vor.u32 %v638, %v642
          %v645 = vshll.u32 %v565, 16
          %v647 = vrot.slane %v645, 1
          %v648 = vsel %vm576, %v643, %v647
          %v650 = vshrl.u32 %v518, 16
          %v652 = vshll.u32 %v518, 16
          %v654 = vrot.slane %v652, 1
          %v655 = vor.u32 %v650, %v654
          %v657 = vshll.u32 %v566, 16
          %v659 = vrot.slane %v657, 1
          %v660 = vsel %vm576, %v655, %v659
          %v662 = vshrl.u32 %v519, 16
          %v664 = vshll.u32 %v519, 16
          %v666 = vrot.slane %v664, 1
          %v667 = vor.u32 %v662, %v666
          %v669 = vshll.u32 %v567, 16
          %v671 = vrot.slane %v669, 1
          %v672 = vsel %vm576, %v667, %v671
          %v674 = vshrl.u32 %v520, 16
          %v676 = vshll.u32 %v520, 16
          %v678 = vrot.slane %v676, 1
          %v679 = vor.u32 %v674, %v678
          %v681 = vshll.u32 %v568, 16
          %v683 = vrot.slane %v681, 1
          %v684 = vsel %vm576, %v679, %v683
          %v686 = vshrl.u32 %v521, 16
          %v688 = vshll.u32 %v521, 16
          %v690 = vrot.slane %v688, 1
          %v691 = vor.u32 %v686, %v690
          %v693 = vshll.u32 %v569, 16
          %v695 = vrot.slane %v693, 1
          %v696 = vsel %vm576, %v691, %v695
          %v698 = vshrl.u32 %v522, 16
          %v700 = vshll.u32 %v522, 16
          %v702 = vrot.slane %v700, 1
          %v703 = vor.u32 %v698, %v702
          %v705 = vshll.u32 %v570, 16
          %v707 = vrot.slane %v705, 1
          %v708 = vsel %vm576, %v703, %v707
          %v710 = vshrl.u32 %v523, 16
          %v712 = vshll.u32 %v523, 16
          %v714 = vrot.slane %v712, 1
          %v715 = vor.u32 %v710, %v714
          %v717 = vshll.u32 %v571, 16
          %v719 = vrot.slane %v717, 1
          %v720 = vsel %vm576, %v715, %v719
          %v722 = vshrl.u32 %v524, 16
          %v724 = vshll.u32 %v524, 16
          %v726 = vrot.slane %v724, 1
          %v727 = vor.u32 %v722, %v726
          %v729 = vshll.u32 %v572, 16
          %v731 = vrot.slane %v729, 1
          %v732 = vsel %vm576, %v727, %v731
          %v734 = vshrl.u32 %v525, 16
          %v736 = vshll.u32 %v525, 16
          %v738 = vrot.slane %v736, 1
          %v739 = vor.u32 %v734, %v738
          %v741 = vshll.u32 %v573, 16
          %v743 = vrot.slane %v741, 1
          %v744 = vsel %vm576, %v739, %v743
          %v746 = vshrl.u32 %v526, 16
          %v748 = vshll.u32 %v526, 16
          %v750 = vrot.slane %v748, 1
          %v751 = vor.u32 %v746, %v750
          %v753 = vshll.u32 %v574, 16
          %v755 = vrot.slane %v753, 1
          %v756 = vsel %vm576, %v751, %v755
          %v758 = vshrl.u32 %v527, 16
          %v760 = vshll.u32 %v527, 16
          %v762 = vrot.slane %v760, 1
          %v763 = vor.u32 %v758, %v762
          %v765 = vshll.u32 %v575, 16
          %v767 = vrot.slane %v765, 1
          %v768 = vsel %vm576, %v763, %v767
          %769 = vrot.lane.b32.xlu0 %v588, 4
          %v770 = vpop.permute.xlu0 %769
          %771 = vrot.lane.b32.xlu0 %v600, 4
          %v772 = vpop.permute.xlu0 %771
          %773 = vrot.lane.b32.xlu0 %v612, 4
          %v774 = vpop.permute.xlu0 %773
          %775 = vrot.lane.b32.xlu0 %v624, 4
          %v776 = vpop.permute.xlu0 %775
          %777 = vrot.lane.b32.xlu0 %v636, 4
          %v778 = vpop.permute.xlu0 %777
          %779 = vrot.lane.b32.xlu0 %v648, 4
          %v780 = vpop.permute.xlu0 %779
          %781 = vrot.lane.b32.xlu0 %v660, 4
          %v782 = vpop.permute.xlu0 %781
          %783 = vrot.lane.b32.xlu0 %v672, 4
          %v784 = vpop.permute.xlu0 %783
          %785 = vrot.lane.b32.xlu0 %v684, 4
          %v786 = vpop.permute.xlu0 %785
          %787 = vrot.lane.b32.xlu0 %v696, 4
          %v788 = vpop.permute.xlu0 %787
          %789 = vrot.lane.b32.xlu0 %v708, 4
          %v790 = vpop.permute.xlu0 %789
          %791 = vrot.lane.b32.xlu0 %v720, 4
          %v792 = vpop.permute.xlu0 %791
          %793 = vrot.lane.b32.xlu0 %v732, 4
          %v794 = vpop.permute.xlu0 %793
          %795 = vrot.lane.b32.xlu0 %v744, 4
          %v796 = vpop.permute.xlu0 %795
          %797 = vrot.lane.b32.xlu0 %v756, 4
          %v798 = vpop.permute.xlu0 %797
          %799 = vrot.lane.b32.xlu0 %v768, 4
          %v800 = vpop.permute.xlu0 %799
          %vm801 = vcmask 1046528
          %v802 = vrot.slane %v512, 1
          %v803 = vrot.slane %v560, 1
          %v804 = vsel %vm801, %v802, %v803
          %v805 = vrot.slane %v513, 1
          %v806 = vrot.slane %v561, 1
          %v807 = vsel %vm801, %v805, %v806
          %v808 = vrot.slane %v514, 1
          %v809 = vrot.slane %v562, 1
          %v810 = vsel %vm801, %v808, %v809
          %v811 = vrot.slane %v515, 1
          %v812 = vrot.slane %v563, 1
          %v813 = vsel %vm801, %v811, %v812
          %v814 = vrot.slane %v516, 1
          %v815 = vrot.slane %v564, 1
          %v816 = vsel %vm801, %v814, %v815
          %v817 = vrot.slane %v517, 1
          %v818 = vrot.slane %v565, 1
          %v819 = vsel %vm801, %v817, %v818
          %v820 = vrot.slane %v518, 1
          %v821 = vrot.slane %v566, 1
          %v822 = vsel %vm801, %v820, %v821
          %v823 = vrot.slane %v519, 1
          %v824 = vrot.slane %v567, 1
          %v825 = vsel %vm801, %v823, %v824
          %v826 = vrot.slane %v520, 1
          %v827 = vrot.slane %v568, 1
          %v828 = vsel %vm801, %v826, %v827
          %v829 = vrot.slane %v521, 1
          %v830 = vrot.slane %v569, 1
          %v831 = vsel %vm801, %v829, %v830
          %v832 = vrot.slane %v522, 1
          %v833 = vrot.slane %v570, 1
          %v834 = vsel %vm801, %v832, %v833
          %v835 = vrot.slane %v523, 1
          %v836 = vrot.slane %v571, 1
          %v837 = vsel %vm801, %v835, %v836
          %v838 = vrot.slane %v524, 1
          %v839 = vrot.slane %v572, 1
          %v840 = vsel %vm801, %v838, %v839
          %v841 = vrot.slane %v525, 1
          %v842 = vrot.slane %v573, 1
          %v843 = vsel %vm801, %v841, %v842
          %v844 = vrot.slane %v526, 1
          %v845 = vrot.slane %v574, 1
          %v846 = vsel %vm801, %v844, %v845
          %v847 = vrot.slane %v527, 1
          %v848 = vrot.slane %v575, 1
          %v849 = vsel %vm801, %v847, %v848
          %850 = vrot.lane.b32.xlu0 %v804, 8
          %v851 = vpop.permute.xlu0 %850
          %852 = vrot.lane.b32.xlu0 %v807, 8
          %v853 = vpop.permute.xlu0 %852
          %854 = vrot.lane.b32.xlu0 %v810, 8
          %v855 = vpop.permute.xlu0 %854
          %856 = vrot.lane.b32.xlu0 %v813, 8
          %v857 = vpop.permute.xlu0 %856
          %858 = vrot.lane.b32.xlu0 %v816, 8
          %v859 = vpop.permute.xlu0 %858
          %860 = vrot.lane.b32.xlu0 %v819, 8
          %v861 = vpop.permute.xlu0 %860
          %862 = vrot.lane.b32.xlu0 %v822, 8
          %v863 = vpop.permute.xlu0 %862
          %864 = vrot.lane.b32.xlu0 %v825, 8
          %v865 = vpop.permute.xlu0 %864
          %866 = vrot.lane.b32.xlu0 %v828, 8
          %v867 = vpop.permute.xlu0 %866
          %868 = vrot.lane.b32.xlu0 %v831, 8
          %v869 = vpop.permute.xlu0 %868
          %870 = vrot.lane.b32.xlu0 %v834, 8
          %v871 = vpop.permute.xlu0 %870
          %872 = vrot.lane.b32.xlu0 %v837, 8
          %v873 = vpop.permute.xlu0 %872
          %874 = vrot.lane.b32.xlu0 %v840, 8
          %v875 = vpop.permute.xlu0 %874
          %876 = vrot.lane.b32.xlu0 %v843, 8
          %v877 = vpop.permute.xlu0 %876
          %878 = vrot.lane.b32.xlu0 %v846, 8
          %v879 = vpop.permute.xlu0 %878
          %880 = vrot.lane.b32.xlu0 %v849, 8
          %v881 = vpop.permute.xlu0 %880
          %v884 = vunpack.c.l.b16 %v442
          %v885 = vunpack.c.l.b16 %v443
          %v886 = vpack.c.b16 %v885, %v884
          %887 = vrot.lane.b32.xlu0 %v513, 12
          %v888 = vpop.permute.xlu0 %887
          %889 = vrot.lane.b32.xlu0 %v514, 12
          %v890 = vpop.permute.xlu0 %889
          %891 = vrot.lane.b32.xlu0 %v515, 12
          %v892 = vpop.permute.xlu0 %891
          %893 = vrot.lane.b32.xlu0 %v516, 12
          %v894 = vpop.permute.xlu0 %893
          %895 = vrot.lane.b32.xlu0 %v517, 12
          %v896 = vpop.permute.xlu0 %895
          %897 = vrot.lane.b32.xlu0 %v518, 12
          %v898 = vpop.permute.xlu0 %897
          %899 = vrot.lane.b32.xlu0 %v519, 12
          %v900 = vpop.permute.xlu0 %899
          %901 = vrot.lane.b32.xlu0 %v520, 12
          %v902 = vpop.permute.xlu0 %901
          %903 = vrot.lane.b32.xlu0 %v521, 12
          %v904 = vpop.permute.xlu0 %903
          %905 = vrot.lane.b32.xlu0 %v522, 12
          %v906 = vpop.permute.xlu0 %905
          %907 = vrot.lane.b32.xlu0 %v523, 12
          %v908 = vpop.permute.xlu0 %907
          %909 = vrot.lane.b32.xlu0 %v524, 12
          %v910 = vpop.permute.xlu0 %909
          %911 = vrot.lane.b32.xlu0 %v525, 12
          %v912 = vpop.permute.xlu0 %911
          %913 = vrot.lane.b32.xlu0 %v526, 12
          %v914 = vpop.permute.xlu0 %913
          %915 = vrot.lane.b32.xlu0 %v527, 12
          %v916 = vpop.permute.xlu0 %915
          %917 = vrot.lane.b32.xlu0 %v886, 12
          %v918 = vpop.permute.xlu0 %917
          %v920 = vunpack.c.l.b16 %v444
          %v921 = vpack.c.b16 %v920, %v920
          %v923 = vshrl.u32 %v886, 16
          %v925 = vshll.u32 %v886, 16
          %v927 = vrot.slane %v925, 1
          %v928 = vor.u32 %v923, %v927
          %v930 = vshll.u32 %v921, 16
          %v932 = vrot.slane %v930, 1
          %v933 = vsel %vm576, %v928, %v932
          %934 = vrot.lane.b32.xlu0 %v600, 16
          %v935 = vpop.permute.xlu0 %934
          %936 = vrot.lane.b32.xlu0 %v612, 16
          %v937 = vpop.permute.xlu0 %936
          %938 = vrot.lane.b32.xlu0 %v624, 16
          %v939 = vpop.permute.xlu0 %938
          %940 = vrot.lane.b32.xlu0 %v636, 16
          %v941 = vpop.permute.xlu0 %940
          %942 = vrot.lane.b32.xlu0 %v648, 16
          %v943 = vpop.permute.xlu0 %942
          %944 = vrot.lane.b32.xlu0 %v660, 16
          %v945 = vpop.permute.xlu0 %944
          %946 = vrot.lane.b32.xlu0 %v672, 16
          %v947 = vpop.permute.xlu0 %946
          %948 = vrot.lane.b32.xlu0 %v684, 16
          %v949 = vpop.permute.xlu0 %948
          %950 = vrot.lane.b32.xlu0 %v696, 16
          %v951 = vpop.permute.xlu0 %950
          %952 = vrot.lane.b32.xlu0 %v708, 16
          %v953 = vpop.permute.xlu0 %952
          %954 = vrot.lane.b32.xlu0 %v720, 16
          %v955 = vpop.permute.xlu0 %954
          %956 = vrot.lane.b32.xlu0 %v732, 16
          %v957 = vpop.permute.xlu0 %956
          %958 = vrot.lane.b32.xlu0 %v744, 16
          %v959 = vpop.permute.xlu0 %958
          %960 = vrot.lane.b32.xlu0 %v756, 16
          %v961 = vpop.permute.xlu0 %960
          %962 = vrot.lane.b32.xlu0 %v768, 16
          %v963 = vpop.permute.xlu0 %962
          %964 = vrot.lane.b32.xlu0 %v933, 16
          %v965 = vpop.permute.xlu0 %964
          %v966 = vrot.slane %v886, 1
          %v967 = vrot.slane %v921, 1
          %v968 = vsel %vm801, %v966, %v967
          %969 = vrot.lane.b32.xlu0 %v807, 20
          %v970 = vpop.permute.xlu0 %969
          %971 = vrot.lane.b32.xlu0 %v810, 20
          %v972 = vpop.permute.xlu0 %971
          %973 = vrot.lane.b32.xlu0 %v813, 20
          %v974 = vpop.permute.xlu0 %973
          %975 = vrot.lane.b32.xlu0 %v816, 20
          %v976 = vpop.permute.xlu0 %975
          %977 = vrot.lane.b32.xlu0 %v819, 20
          %v978 = vpop.permute.xlu0 %977
          %979 = vrot.lane.b32.xlu0 %v822, 20
          %v980 = vpop.permute.xlu0 %979
          %981 = vrot.lane.b32.xlu0 %v825, 20
          %v982 = vpop.permute.xlu0 %981
          %983 = vrot.lane.b32.xlu0 %v828, 20
          %v984 = vpop.permute.xlu0 %983
          %985 = vrot.lane.b32.xlu0 %v831, 20
          %v986 = vpop.permute.xlu0 %985
          %987 = vrot.lane.b32.xlu0 %v834, 20
          %v988 = vpop.permute.xlu0 %987
          %989 = vrot.lane.b32.xlu0 %v837, 20
          %v990 = vpop.permute.xlu0 %989
          %991 = vrot.lane.b32.xlu0 %v840, 20
          %v992 = vpop.permute.xlu0 %991
          %993 = vrot.lane.b32.xlu0 %v843, 20
          %v994 = vpop.permute.xlu0 %993
          %995 = vrot.lane.b32.xlu0 %v846, 20
          %v996 = vpop.permute.xlu0 %995
          %997 = vrot.lane.b32.xlu0 %v849, 20
          %v998 = vpop.permute.xlu0 %997
          %999 = vrot.lane.b32.xlu0 %v968, 20
          %v1000 = vpop.permute.xlu0 %999
          %v1003 = vunpack.c.l.b16 %v445
          %v1004 = vunpack.c.l.b16 %v446
          %v1005 = vpack.c.b16 %v1004, %v1003
          %1006 = vrot.lane.b32.xlu0 %v514, 24
          %v1007 = vpop.permute.xlu0 %1006
          %1008 = vrot.lane.b32.xlu0 %v515, 24
          %v1009 = vpop.permute.xlu0 %1008
          %1010 = vrot.lane.b32.xlu0 %v516, 24
          %v1011 = vpop.permute.xlu0 %1010
          %1012 = vrot.lane.b32.xlu0 %v517, 24
          %v1013 = vpop.permute.xlu0 %1012
          %1014 = vrot.lane.b32.xlu0 %v518, 24
          %v1015 = vpop.permute.xlu0 %1014
          %1016 = vrot.lane.b32.xlu0 %v519, 24
          %v1017 = vpop.permute.xlu0 %1016
          %1018 = vrot.lane.b32.xlu0 %v520, 24
          %v1019 = vpop.permute.xlu0 %1018
          %1020 = vrot.lane.b32.xlu0 %v521, 24
          %v1021 = vpop.permute.xlu0 %1020
          %1022 = vrot.lane.b32.xlu0 %v522, 24
          %v1023 = vpop.permute.xlu0 %1022
          %1024 = vrot.lane.b32.xlu0 %v523, 24
          %v1025 = vpop.permute.xlu0 %1024
          %1026 = vrot.lane.b32.xlu0 %v524, 24
          %v1027 = vpop.permute.xlu0 %1026
          %1028 = vrot.lane.b32.xlu0 %v525, 24
          %v1029 = vpop.permute.xlu0 %1028
          %1030 = vrot.lane.b32.xlu0 %v526, 24
          %v1031 = vpop.permute.xlu0 %1030
          %1032 = vrot.lane.b32.xlu0 %v527, 24
          %v1033 = vpop.permute.xlu0 %1032
          %1034 = vrot.lane.b32.xlu0 %v886, 24
          %v1035 = vpop.permute.xlu0 %1034
          %1036 = vrot.lane.b32.xlu0 %v1005, 24
          %v1037 = vpop.permute.xlu0 %1036
          %v1039 = vunpack.c.l.b16 %v447
          %v1040 = vpack.c.b16 %v1039, %v1039
          %v1042 = vshrl.u32 %v1005, 16
          %v1044 = vshll.u32 %v1005, 16
          %v1046 = vrot.slane %v1044, 1
          %v1047 = vor.u32 %v1042, %v1046
          %v1049 = vshll.u32 %v1040, 16
          %v1051 = vrot.slane %v1049, 1
          %v1052 = vsel %vm576, %v1047, %v1051
          %1053 = vrot.lane.b32.xlu0 %v612, 28
          %v1054 = vpop.permute.xlu0 %1053
          %1055 = vrot.lane.b32.xlu0 %v624, 28
          %v1056 = vpop.permute.xlu0 %1055
          %1057 = vrot.lane.b32.xlu0 %v636, 28
          %v1058 = vpop.permute.xlu0 %1057
          %1059 = vrot.lane.b32.xlu0 %v648, 28
          %v1060 = vpop.permute.xlu0 %1059
          %1061 = vrot.lane.b32.xlu0 %v660, 28
          %v1062 = vpop.permute.xlu0 %1061
          %1063 = vrot.lane.b32.xlu0 %v672, 28
          %v1064 = vpop.permute.xlu0 %1063
          %1065 = vrot.lane.b32.xlu0 %v684, 28
          %v1066 = vpop.permute.xlu0 %1065
          %1067 = vrot.lane.b32.xlu0 %v696, 28
          %v1068 = vpop.permute.xlu0 %1067
          %1069 = vrot.lane.b32.xlu0 %v708, 28
          %v1070 = vpop.permute.xlu0 %1069
          %1071 = vrot.lane.b32.xlu0 %v720, 28
          %v1072 = vpop.permute.xlu0 %1071
          %1073 = vrot.lane.b32.xlu0 %v732, 28
          %v1074 = vpop.permute.xlu0 %1073
          %1075 = vrot.lane.b32.xlu0 %v744, 28
          %v1076 = vpop.permute.xlu0 %1075
          %1077 = vrot.lane.b32.xlu0 %v756, 28
          %v1078 = vpop.permute.xlu0 %1077
          %1079 = vrot.lane.b32.xlu0 %v768, 28
          %v1080 = vpop.permute.xlu0 %1079
          %1081 = vrot.lane.b32.xlu0 %v933, 28
          %v1082 = vpop.permute.xlu0 %1081
          %1083 = vrot.lane.b32.xlu0 %v1052, 28
          %v1084 = vpop.permute.xlu0 %1083
          %v1085 = vrot.slane %v1005, 1
          %v1086 = vrot.slane %v1040, 1
          %v1087 = vsel %vm801, %v1085, %v1086
          %1088 = vrot.lane.b32.xlu0 %v810, 32
          %v1089 = vpop.permute.xlu0 %1088
          %1090 = vrot.lane.b32.xlu0 %v813, 32
          %v1091 = vpop.permute.xlu0 %1090
          %1092 = vrot.lane.b32.xlu0 %v816, 32
          %v1093 = vpop.permute.xlu0 %1092
          %1094 = vrot.lane.b32.xlu0 %v819, 32
          %v1095 = vpop.permute.xlu0 %1094
          %1096 = vrot.lane.b32.xlu0 %v822, 32
          %v1097 = vpop.permute.xlu0 %1096
          %1098 = vrot.lane.b32.xlu0 %v825, 32
          %v1099 = vpop.permute.xlu0 %1098
          %1100 = vrot.lane.b32.xlu0 %v828, 32
          %v1101 = vpop.permute.xlu0 %1100
          %1102 = vrot.lane.b32.xlu0 %v831, 32
          %v1103 = vpop.permute.xlu0 %1102
          %1104 = vrot.lane.b32.xlu0 %v834, 32
          %v1105 = vpop.permute.xlu0 %1104
          %1106 = vrot.lane.b32.xlu0 %v837, 32
          %v1107 = vpop.permute.xlu0 %1106
          %1108 = vrot.lane.b32.xlu0 %v840, 32
          %v1109 = vpop.permute.xlu0 %1108
          %1110 = vrot.lane.b32.xlu0 %v843, 32
          %v1111 = vpop.permute.xlu0 %1110
          %1112 = vrot.lane.b32.xlu0 %v846, 32
          %v1113 = vpop.permute.xlu0 %1112
          %1114 = vrot.lane.b32.xlu0 %v849, 32
          %v1115 = vpop.permute.xlu0 %1114
          %1116 = vrot.lane.b32.xlu0 %v968, 32
          %v1117 = vpop.permute.xlu0 %1116
          %1118 = vrot.lane.b32.xlu0 %v1087, 32
          %v1119 = vpop.permute.xlu0 %1118
          %vm1120 = vcmask 31744
          %v1122 = vsel %vm1120, %v512, %v770
          %v1124 = vsel %vm1120, %v513, %v772
          %v1126 = vsel %vm1120, %v514, %v774
          %v1128 = vsel %vm1120, %v515, %v776
          %v1130 = vsel %vm1120, %v516, %v778
          %v1132 = vsel %vm1120, %v517, %v780
          %v1134 = vsel %vm1120, %v518, %v782
          %v1136 = vsel %vm1120, %v519, %v784
          %v1138 = vsel %vm1120, %v520, %v786
          %v1140 = vsel %vm1120, %v521, %v788
          %v1142 = vsel %vm1120, %v522, %v790
          %v1144 = vsel %vm1120, %v523, %v792
          %v1146 = vsel %vm1120, %v524, %v794
          %v1148 = vsel %vm1120, %v525, %v796
          %v1150 = vsel %vm1120, %v526, %v798
          %v1152 = vsel %vm1120, %v527, %v800
          %vm1153 = vcmask 64512
          %v1155 = vsel %vm1153, %v1122, %v851
          %v1157 = vsel %vm1153, %v1124, %v853
          %v1159 = vsel %vm1153, %v1126, %v855
          %v1161 = vsel %vm1153, %v1128, %v857
          %v1163 = vsel %vm1153, %v1130, %v859
          %v1165 = vsel %vm1153, %v1132, %v861
          %v1167 = vsel %vm1153, %v1134, %v863
          %v1169 = vsel %vm1153, %v1136, %v865
          %v1171 = vsel %vm1153, %v1138, %v867
          %v1173 = vsel %vm1153, %v1140, %v869
          %v1175 = vsel %vm1153, %v1142, %v871
          %v1177 = vsel %vm1153, %v1144, %v873
          %v1179 = vsel %vm1153, %v1146, %v875
          %v1181 = vsel %vm1153, %v1148, %v877
          %v1183 = vsel %vm1153, %v1150, %v879
          %v1185 = vsel %vm1153, %v1152, %v881
          %vm1186 = vcmask 97280
          %v1188 = vsel %vm1186, %v1155, %v888
          %v1190 = vsel %vm1186, %v1157, %v890
          %v1192 = vsel %vm1186, %v1159, %v892
          %v1194 = vsel %vm1186, %v1161, %v894
          %v1196 = vsel %vm1186, %v1163, %v896
          %v1198 = vsel %vm1186, %v1165, %v898
          %v1200 = vsel %vm1186, %v1167, %v900
          %v1202 = vsel %vm1186, %v1169, %v902
          %v1204 = vsel %vm1186, %v1171, %v904
          %v1206 = vsel %vm1186, %v1173, %v906
          %v1208 = vsel %vm1186, %v1175, %v908
          %v1210 = vsel %vm1186, %v1177, %v910
          %v1212 = vsel %vm1186, %v1179, %v912
          %v1214 = vsel %vm1186, %v1181, %v914
          %v1216 = vsel %vm1186, %v1183, %v916
          %v1218 = vsel %vm1186, %v1185, %v918
          %vm1219 = vcmask 130048
          %v1221 = vsel %vm1219, %v1188, %v935
          %v1223 = vsel %vm1219, %v1190, %v937
          %v1225 = vsel %vm1219, %v1192, %v939
          %v1227 = vsel %vm1219, %v1194, %v941
          %v1229 = vsel %vm1219, %v1196, %v943
          %v1231 = vsel %vm1219, %v1198, %v945
          %v1233 = vsel %vm1219, %v1200, %v947
          %v1235 = vsel %vm1219, %v1202, %v949
          %v1237 = vsel %vm1219, %v1204, %v951
          %v1239 = vsel %vm1219, %v1206, %v953
          %v1241 = vsel %vm1219, %v1208, %v955
          %v1243 = vsel %vm1219, %v1210, %v957
          %v1245 = vsel %vm1219, %v1212, %v959
          %v1247 = vsel %vm1219, %v1214, %v961
          %v1249 = vsel %vm1219, %v1216, %v963
          %v1251 = vsel %vm1219, %v1218, %v965
          %vm1252 = vcmask 162816
          %v1254 = vsel %vm1252, %v1221, %v970
          %v1256 = vsel %vm1252, %v1223, %v972
          %v1258 = vsel %vm1252, %v1225, %v974
          %v1260 = vsel %vm1252, %v1227, %v976
          %v1262 = vsel %vm1252, %v1229, %v978
          %v1264 = vsel %vm1252, %v1231, %v980
          %v1266 = vsel %vm1252, %v1233, %v982
          %v1268 = vsel %vm1252, %v1235, %v984
          %v1270 = vsel %vm1252, %v1237, %v986
          %v1272 = vsel %vm1252, %v1239, %v988
          %v1274 = vsel %vm1252, %v1241, %v990
          %v1276 = vsel %vm1252, %v1243, %v992
          %v1278 = vsel %vm1252, %v1245, %v994
          %v1280 = vsel %vm1252, %v1247, %v996
          %v1282 = vsel %vm1252, %v1249, %v998
          %v1284 = vsel %vm1252, %v1251, %v1000
          %vm1285 = vcmask 195584
          %v1287 = vsel %vm1285, %v1254, %v1007
          %v1289 = vsel %vm1285, %v1256, %v1009
          %v1291 = vsel %vm1285, %v1258, %v1011
          %v1293 = vsel %vm1285, %v1260, %v1013
          %v1295 = vsel %vm1285, %v1262, %v1015
          %v1297 = vsel %vm1285, %v1264, %v1017
          %v1299 = vsel %vm1285, %v1266, %v1019
          %v1301 = vsel %vm1285, %v1268, %v1021
          %v1303 = vsel %vm1285, %v1270, %v1023
          %v1305 = vsel %vm1285, %v1272, %v1025
          %v1307 = vsel %vm1285, %v1274, %v1027
          %v1309 = vsel %vm1285, %v1276, %v1029
          %v1311 = vsel %vm1285, %v1278, %v1031
          %v1313 = vsel %vm1285, %v1280, %v1033
          %v1315 = vsel %vm1285, %v1282, %v1035
          %v1317 = vsel %vm1285, %v1284, %v1037
          %vm1318 = vcmask 228352
          %v1320 = vsel %vm1318, %v1287, %v1054
          %v1322 = vsel %vm1318, %v1289, %v1056
          %v1324 = vsel %vm1318, %v1291, %v1058
          %v1326 = vsel %vm1318, %v1293, %v1060
          %v1328 = vsel %vm1318, %v1295, %v1062
          %v1330 = vsel %vm1318, %v1297, %v1064
          %v1332 = vsel %vm1318, %v1299, %v1066
          %v1334 = vsel %vm1318, %v1301, %v1068
          %v1336 = vsel %vm1318, %v1303, %v1070
          %v1338 = vsel %vm1318, %v1305, %v1072
          %v1340 = vsel %vm1318, %v1307, %v1074
          %v1342 = vsel %vm1318, %v1309, %v1076
          %v1344 = vsel %vm1318, %v1311, %v1078
          %v1346 = vsel %vm1318, %v1313, %v1080
          %v1348 = vsel %vm1318, %v1315, %v1082
          %v1350 = vsel %vm1318, %v1317, %v1084
          %vm1351 = vcmask 261120
          %v1353 = vsel %vm1351, %v1320, %v1089
          %v1356 = vsel %vm1351, %v1322, %v1091
          %v1359 = vsel %vm1351, %v1324, %v1093
          %v1362 = vsel %vm1351, %v1326, %v1095
          %v1365 = vsel %vm1351, %v1328, %v1097
          %v1368 = vsel %vm1351, %v1330, %v1099
          %v1371 = vsel %vm1351, %v1332, %v1101
          %v1374 = vsel %vm1351, %v1334, %v1103
          %v1377 = vsel %vm1351, %v1336, %v1105
          %v1380 = vsel %vm1351, %v1338, %v1107
          %v1383 = vsel %vm1351, %v1340, %v1109
          %v1386 = vsel %vm1351, %v1342, %v1111
          %v1389 = vsel %vm1351, %v1344, %v1113
          %v1392 = vsel %vm1351, %v1346, %v1115
          %v1395 = vsel %vm1351, %v1348, %v1117
          %v1398 = vsel %vm1351, %v1350, %v1119
          %vm1400 = vcmask 293888
          %1401 = vst.msk [vmem:[#allocation2] sm:$0xff] %vm1400, %v1353
          %1402 = vst.msk [vmem:[#allocation2 + $0x8] sm:$0xff] %vm1400, %v1356
          %1403 = vst.msk [vmem:[#allocation2 + $0x10] sm:$0xff] %vm1400, %v1359
          %1404 = vst.msk [vmem:[#allocation2 + $0x18] sm:$0xff] %vm1400, %v1362
          %1405 = vst.msk [vmem:[#allocation2 + $0x20] sm:$0xff] %vm1400, %v1365
          %1406 = vst.msk [vmem:[#allocation2 + $0x28] sm:$0xff] %vm1400, %v1368
          %1407 = vst.msk [vmem:[#allocation2 + $0x30] sm:$0xff] %vm1400, %v1371
          %1408 = vst.msk [vmem:[#allocation2 + $0x38] sm:$0xff] %vm1400, %v1374
          %1409 = vst.msk [vmem:[#allocation2 + $0x40] sm:$0xff] %vm1400, %v1377
          %1410 = vst.msk [vmem:[#allocation2 + $0x48] sm:$0xff] %vm1400, %v1380
          %1411 = vst.msk [vmem:[#allocation2 + $0x50] sm:$0xff] %vm1400, %v1383
          %1412 = vst.msk [vmem:[#allocation2 + $0x58] sm:$0xff] %vm1400, %v1386
          %1413 = vst.msk [vmem:[#allocation2 + $0x60] sm:$0xff] %vm1400, %v1389
          %1414 = vst.msk [vmem:[#allocation2 + $0x68] sm:$0xff] %vm1400, %v1392
          %1415 = vst.msk [vmem:[#allocation2 + $0x70] sm:$0xff] %vm1400, %v1395
          %1416 = vst.msk [vmem:[#allocation2 + $0x78] sm:$0xff] %vm1400, %v1398
        $region44: #{tpu_custom_call.1} parent=39 // pred_fallthru
          _
        %v1417 = vld [vmem:[#allocation2] sm:$0xff]
        %v1418 = vld [vmem:[#allocation2 + $0x8] sm:$0xff]
        %v1419 = vld [vmem:[#allocation2 + $0x10] sm:$0xff]
        %v1420 = vld [vmem:[#allocation2 + $0x18] sm:$0xff]
        %v1421 = vld [vmem:[#allocation2 + $0x20] sm:$0xff]
        %v1422 = vld [vmem:[#allocation2 + $0x28] sm:$0xff]
        %v1423 = vld [vmem:[#allocation2 + $0x30] sm:$0xff]
        %v1424 = vld [vmem:[#allocation2 + $0x38] sm:$0xff]
        %v1425 = vld [vmem:[#allocation2 + $0x40] sm:$0xff]
        %v1426 = vld [vmem:[#allocation2 + $0x48] sm:$0xff]
        %v1427 = vld [vmem:[#allocation2 + $0x50] sm:$0xff]
        %v1428 = vld [vmem:[#allocation2 + $0x58] sm:$0xff]
        %v1429 = vld [vmem:[#allocation2 + $0x60] sm:$0xff]
        %v1430 = vld [vmem:[#allocation2 + $0x68] sm:$0xff]
        %v1431 = vld [vmem:[#allocation2 + $0x70] sm:$0xff]
        %v1432 = vld [vmem:[#allocation2 + $0x78] sm:$0xff]
        %v1433 = vld [vmem:[%s381] sm:$0xf]
        %v1434 = vld [vmem:[%s381 + $0x4] sm:$0xf]
        %v1435 = vld [vmem:[%s381 + $0x8] sm:$0xf]
        %v1436 = vld [vmem:[%s381 + $0xc] sm:$0xf]
        %v1437 = vld [vmem:[%s381 + $0x10] sm:$0x3]
        %v1443 = vunpack.c.l.b16 %v1433
        %v1444 = vunpack.c.l.b16 %v1434
        %v1445 = vunpack.c.l.b16 %v1435
        %v1446 = vunpack.c.l.b16 %v1436
        %v1447 = vunpack.c.l.b16 %v1437
        %v1448 = vpack.c.b16 %v1444, %v1443
        %v1449 = vpack.c.b16 %v1446, %v1445
        %v1450 = vpack.c.b16 %v1447, %v1447
        %vm1453 = vcmask 293888
        %v1455 = vsel %vm1453, %v1417, 0
        %v1458 = vsel %vm1453, %v1418, 0
        %v1461 = vsel %vm1453, %v1419, 0
        %v1464 = vsel %vm1453, %v1420, 0
        %v1467 = vsel %vm1453, %v1421, 0
        %v1470 = vsel %vm1453, %v1422, 0
        %v1473 = vsel %vm1453, %v1423, 0
        %v1476 = vsel %vm1453, %v1424, 0
        %v1479 = vsel %vm1453, %v1425, 0
        %v1482 = vsel %vm1453, %v1426, 0
        %v1485 = vsel %vm1453, %v1427, 0
        %v1488 = vsel %vm1453, %v1428, 0
        %v1491 = vsel %vm1453, %v1429, 0
        %v1494 = vsel %vm1453, %v1430, 0
        %v1497 = vsel %vm1453, %v1431, 0
        %v1500 = vsel %vm1453, %v1432, 0
        %vm1502 = vcmask 1041408
        %v1504 = vsel %vm1502, %v1450, 0
        %1506 = vmatprep.subr.bf16.mxu0 0
        %1507 = vmatpush1.bf16.msra.mxu0 %v1448
        %1508 = vmatprep.subr.bf16.mxu0 0
        %1509 = vmatpush1.bf16.msra.mxu0 %v1449
        %1510 = vmatprep.subr.bf16.mxu0 0
        %1511 = vmatpush1.bf16.msra.mxu0 %v1504
        %1512 = vmatprep.subr.bf16.mxu0 0
        %1513 = vmatpush1.bf16.msra.mxu0 0
        %1514 = vmatprep.subr.bf16.mxu0 0
        %1515 = vmatpush1.bf16.msra.mxu0 0
        %1516 = vmatprep.subr.bf16.mxu0 0
        %1517 = vmatpush1.bf16.msra.mxu0 0
        %1518 = vmatprep.subr.bf16.mxu0 0
        %1519 = vmatpush1.bf16.msra.mxu0 0
        %1520 = vmatprep.subr.bf16.mxu0 0
        %1521 = vmatpush1.bf16.msra.mxu0 0
        %1522 = vmatprep.subr.bf16.mxu0 0
        %1523 = vmatpush1.bf16.msra.mxu0 0
        %1524 = vmatprep.subr.bf16.mxu0 0
        %1525 = vmatpush1.bf16.msra.mxu0 0
        %1526 = vmatprep.subr.bf16.mxu0 0
        %1527 = vmatpush1.bf16.msra.mxu0 0
        %1528 = vmatprep.subr.bf16.mxu0 0
        %1529 = vmatpush1.bf16.msra.mxu0 0
        %1530 = vmatprep.subr.bf16.mxu0 0
        %1531 = vmatpush1.bf16.msra.mxu0 0
        %1532 = vmatprep.subr.bf16.mxu0 0
        %1533 = vmatpush1.bf16.msra.mxu0 0
        %1534 = vmatprep.subr.bf16.mxu0 0
        %1535 = vmatpush1.bf16.msra.mxu0 0
        %1536 = vmatprep.subr.bf16.mxu0 0
        %1537 = vmatpush1.bf16.msra.mxu0 0
        %1538 = vmatprep.mubr.bf16.mxu0 0
        %1539 = vmatmul.mubr.bf16.gmra.mrb[0].mxu0 %v1455
        %v1540 = vpop.f32.mrb[0].mxu0
        %v1541 = vadd.f32 0.0, %v1540
        %v1542 = vpop.f32.mrb[0].mxu0
        %v1543 = vpop.f32.mrb[0].mxu0
        %v1544 = vadd.f32 0.0, %v1543
        %v1545 = vpop.f32.mrb[0].mxu0
        %1546 = vmatprep.mubr.bf16.mxu0 0
        %1547 = vmatmul.mubr.bf16.gmra.mrb[0].mxu0 %v1458
        %v1548 = vpop.f32.mrb[0].mxu0
        %v1549 = vadd.f32 0.0, %v1548
        %v1550 = vpop.f32.mrb[0].mxu0
        %v1551 = vpop.f32.mrb[0].mxu0
        %v1552 = vadd.f32 0.0, %v1551
        %v1553 = vpop.f32.mrb[0].mxu0
        %1554 = vmatprep.mubr.bf16.mxu0 0
        %1555 = vmatmul.mubr.bf16.gmra.mrb[0].mxu0 %v1461
        %v1556 = vpop.f32.mrb[0].mxu0
        %v1557 = vadd.f32 0.0, %v1556
        %v1558 = vpop.f32.mrb[0].mxu0
        %v1559 = vpop.f32.mrb[0].mxu0
        %v1560 = vadd.f32 0.0, %v1559
        %v1561 = vpop.f32.mrb[0].mxu0
        %1562 = vmatprep.mubr.bf16.mxu0 0
        %1563 = vmatmul.mubr.bf16.gmra.mrb[0].mxu0 %v1464
        %v1564 = vpop.f32.mrb[0].mxu0
        %v1565 = vadd.f32 0.0, %v1564
        %v1566 = vpop.f32.mrb[0].mxu0
        %v1567 = vpop.f32.mrb[0].mxu0
        %v1568 = vadd.f32 0.0, %v1567
        %v1569 = vpop.f32.mrb[0].mxu0
        %1570 = vmatprep.mubr.bf16.mxu0 0
        %1571 = vmatmul.mubr.bf16.gmra.mrb[0].mxu0 %v1467
        %v1572 = vpop.f32.mrb[0].mxu0
        %v1573 = vadd.f32 0.0, %v1572
        %v1574 = vpop.f32.mrb[0].mxu0
        %v1575 = vpop.f32.mrb[0].mxu0
        %v1576 = vadd.f32 0.0, %v1575
        %v1577 = vpop.f32.mrb[0].mxu0
        %1578 = vmatprep.mubr.bf16.mxu0 0
        %1579 = vmatmul.mubr.bf16.gmra.mrb[0].mxu0 %v1470
        %v1580 = vpop.f32.mrb[0].mxu0
        %v1581 = vadd.f32 0.0, %v1580
        %v1582 = vpop.f32.mrb[0].mxu0
        %v1583 = vpop.f32.mrb[0].mxu0
        %v1584 = vadd.f32 0.0, %v1583
        %v1585 = vpop.f32.mrb[0].mxu0
        %1586 = vmatprep.mubr.bf16.mxu0 0
        %1587 = vmatmul.mubr.bf16.gmra.mrb[0].mxu0 %v1473
        %v1588 = vpop.f32.mrb[0].mxu0
        %v1589 = vadd.f32 0.0, %v1588
        %v1590 = vpop.f32.mrb[0].mxu0
        %v1591 = vpop.f32.mrb[0].mxu0
        %v1592 = vadd.f32 0.0, %v1591
        %v1593 = vpop.f32.mrb[0].mxu0
        %1594 = vmatprep.mubr.bf16.mxu0 0
        %1595 = vmatmul.mubr.bf16.gmra.mrb[0].mxu0 %v1476
        %v1596 = vpop.f32.mrb[0].mxu0
        %v1597 = vadd.f32 0.0, %v1596
        %v1598 = vpop.f32.mrb[0].mxu0
        %v1599 = vpop.f32.mrb[0].mxu0
        %v1600 = vadd.f32 0.0, %v1599
        %v1601 = vpop.f32.mrb[0].mxu0
        %1602 = vmatprep.mubr.bf16.mxu0 0
        %1603 = vmatmul.mubr.bf16.gmra.mrb[0].mxu0 %v1479
        %v1604 = vpop.f32.mrb[0].mxu0
        %v1605 = vadd.f32 0.0, %v1604
        %v1606 = vpop.f32.mrb[0].mxu0
        %v1607 = vpop.f32.mrb[0].mxu0
        %v1608 = vadd.f32 0.0, %v1607
        %v1609 = vpop.f32.mrb[0].mxu0
        %1610 = vmatprep.mubr.bf16.mxu0 0
        %1611 = vmatmul.mubr.bf16.gmra.mrb[0].mxu0 %v1482
        %v1612 = vpop.f32.mrb[0].mxu0
        %v1613 = vadd.f32 0.0, %v1612
        %v1614 = vpop.f32.mrb[0].mxu0
        %v1615 = vpop.f32.mrb[0].mxu0
        %v1616 = vadd.f32 0.0, %v1615
        %v1617 = vpop.f32.mrb[0].mxu0
        %1618 = vmatprep.mubr.bf16.mxu0 0
        %1619 = vmatmul.mubr.bf16.gmra.mrb[0].mxu0 %v1485
        %v1620 = vpop.f32.mrb[0].mxu0
        %v1621 = vadd.f32 0.0, %v1620
        %v1622 = vpop.f32.mrb[0].mxu0
        %v1623 = vpop.f32.mrb[0].mxu0
        %v1624 = vadd.f32 0.0, %v1623
        %v1625 = vpop.f32.mrb[0].mxu0
        %1626 = vmatprep.mubr.bf16.mxu0 0
        %1627 = vmatmul.mubr.bf16.gmra.mrb[0].mxu0 %v1488
        %v1628 = vpop.f32.mrb[0].mxu0
        %v1629 = vadd.f32 0.0, %v1628
        %v1630 = vpop.f32.mrb[0].mxu0
        %v1631 = vpop.f32.mrb[0].mxu0
        %v1632 = vadd.f32 0.0, %v1631
        %v1633 = vpop.f32.mrb[0].mxu0
        %1634 = vmatprep.mubr.bf16.mxu0 0
        %1635 = vmatmul.mubr.bf16.gmra.mrb[0].mxu0 %v1491
        %v1636 = vpop.f32.mrb[0].mxu0
        %v1637 = vadd.f32 0.0, %v1636
        %v1638 = vpop.f32.mrb[0].mxu0
        %v1639 = vpop.f32.mrb[0].mxu0
        %v1640 = vadd.f32 0.0, %v1639
        %v1641 = vpop.f32.mrb[0].mxu0
        %1642 = vmatprep.mubr.bf16.mxu0 0
        %1643 = vmatmul.mubr.bf16.gmra.mrb[0].mxu0 %v1494
        %v1644 = vpop.f32.mrb[0].mxu0
        %v1645 = vadd.f32 0.0, %v1644
        %v1646 = vpop.f32.mrb[0].mxu0
        %v1647 = vpop.f32.mrb[0].mxu0
        %v1648 = vadd.f32 0.0, %v1647
        %v1649 = vpop.f32.mrb[0].mxu0
        %1650 = vmatprep.mubr.bf16.mxu0 0
        %1651 = vmatmul.mubr.bf16.gmra.mrb[0].mxu0 %v1497
        %v1652 = vpop.f32.mrb[0].mxu0
        %v1653 = vadd.f32 0.0, %v1652
        %v1654 = vpop.f32.mrb[0].mxu0
        %v1655 = vpop.f32.mrb[0].mxu0
        %v1656 = vadd.f32 0.0, %v1655
        %v1657 = vpop.f32.mrb[0].mxu0
        %1658 = vmatprep.mubr.bf16.mxu0 0
        %1659 = vmatmul.mubr.bf16.gmra.mrb[0].mxu0 %v1500
        %v1660 = vpop.f32.mrb[0].mxu0
        %v1661 = vadd.f32 0.0, %v1660
        %v1662 = vpop.f32.mrb[0].mxu0
        %v1663 = vpop.f32.mrb[0].mxu0
        %v1664 = vadd.f32 0.0, %v1663
        %v1665 = vpop.f32.mrb[0].mxu0
        %1666 = vdwg.mxu0
        %v1667 = vld [vmem:[%s384] sm:$0x1]
        %v1669 = vlaneseq
        %v1670 = vshrl.u32 %v1669, 7
        %v1671 = vsub.s32 0, %v1670
        %v1672 = vrot.slane %v1667, %v1671
        %v1674 = vmul.f32 %v1541, %v1672
        %v1675 = vmul.f32 %v1544, %v1672
        %v1676 = vmul.f32 %v1549, %v1672
        %v1677 = vmul.f32 %v1552, %v1672
        %v1678 = vmul.f32 %v1557, %v1672
        %v1679 = vmul.f32 %v1560, %v1672
        %v1680 = vmul.f32 %v1565, %v1672
        %v1681 = vmul.f32 %v1568, %v1672
        %v1682 = vmul.f32 %v1573, %v1672
        %v1683 = vmul.f32 %v1576, %v1672
        %v1684 = vmul.f32 %v1581, %v1672
        %v1685 = vmul.f32 %v1584, %v1672
        %v1686 = vmul.f32 %v1589, %v1672
        %v1687 = vmul.f32 %v1592, %v1672
        %v1688 = vmul.f32 %v1597, %v1672
        %v1689 = vmul.f32 %v1600, %v1672
        %v1690 = vmul.f32 %v1605, %v1672
        %v1691 = vmul.f32 %v1608, %v1672
        %v1692 = vmul.f32 %v1613, %v1672
        %v1693 = vmul.f32 %v1616, %v1672
        %v1694 = vmul.f32 %v1621, %v1672
        %v1695 = vmul.f32 %v1624, %v1672
        %v1696 = vmul.f32 %v1629, %v1672
        %v1697 = vmul.f32 %v1632, %v1672
        %v1698 = vmul.f32 %v1637, %v1672
        %v1699 = vmul.f32 %v1640, %v1672
        %v1700 = vmul.f32 %v1645, %v1672
        %v1701 = vmul.f32 %v1648, %v1672
        %v1702 = vmul.f32 %v1653, %v1672
        %v1703 = vmul.f32 %v1656, %v1672
        %v1704 = vmul.f32 %v1661, %v1672
        %v1705 = vmul.f32 %v1664, %v1672
        %v1706 = vld [vmem:[%s387] sm:$0x1]
        %v1708 = vlaneseq
        %v1709 = vshrl.u32 %v1708, 7
        %v1710 = vsub.s32 0, %v1709
        %v1711 = vrot.slane %v1706, %v1710
        %v1713 = vadd.f32 %v1674, %v1711
        %v1714 = vadd.f32 %v1675, %v1711
        %v1715 = vadd.f32 %v1676, %v1711
        %v1716 = vadd.f32 %v1677, %v1711
        %v1717 = vadd.f32 %v1678, %v1711
        %v1718 = vadd.f32 %v1679, %v1711
        %v1719 = vadd.f32 %v1680, %v1711
        %v1720 = vadd.f32 %v1681, %v1711
        %v1721 = vadd.f32 %v1682, %v1711
        %v1722 = vadd.f32 %v1683, %v1711
        %v1723 = vadd.f32 %v1684, %v1711
        %v1724 = vadd.f32 %v1685, %v1711
        %v1725 = vadd.f32 %v1686, %v1711
        %v1726 = vadd.f32 %v1687, %v1711
        %v1727 = vadd.f32 %v1688, %v1711
        %v1728 = vadd.f32 %v1689, %v1711
        %v1729 = vadd.f32 %v1690, %v1711
        %v1730 = vadd.f32 %v1691, %v1711
        %v1731 = vadd.f32 %v1692, %v1711
        %v1732 = vadd.f32 %v1693, %v1711
        %v1733 = vadd.f32 %v1694, %v1711
        %v1734 = vadd.f32 %v1695, %v1711
        %v1735 = vadd.f32 %v1696, %v1711
        %v1736 = vadd.f32 %v1697, %v1711
        %v1737 = vadd.f32 %v1698, %v1711
        %v1738 = vadd.f32 %v1699, %v1711
        %v1739 = vadd.f32 %v1700, %v1711
        %v1740 = vadd.f32 %v1701, %v1711
        %v1741 = vadd.f32 %v1702, %v1711
        %v1742 = vadd.f32 %v1703, %v1711
        %v1743 = vadd.f32 %v1704, %v1711
        %v1744 = vadd.f32 %v1705, %v1711
        %v1745 = vmax.f32 %v1713, 0.0
        %v1746 = vmax.f32 %v1714, 0.0
        %v1747 = vmax.f32 %v1715, 0.0
        %v1748 = vmax.f32 %v1716, 0.0
        %v1749 = vmax.f32 %v1717, 0.0
        %v1750 = vmax.f32 %v1718, 0.0
        %v1751 = vmax.f32 %v1719, 0.0
        %v1752 = vmax.f32 %v1720, 0.0
        %v1753 = vmax.f32 %v1721, 0.0
        %v1754 = vmax.f32 %v1722, 0.0
        %v1755 = vmax.f32 %v1723, 0.0
        %v1756 = vmax.f32 %v1724, 0.0
        %v1757 = vmax.f32 %v1725, 0.0
        %v1758 = vmax.f32 %v1726, 0.0
        %v1759 = vmax.f32 %v1727, 0.0
        %v1760 = vmax.f32 %v1728, 0.0
        %v1761 = vmax.f32 %v1729, 0.0
        %v1762 = vmax.f32 %v1730, 0.0
        %v1763 = vmax.f32 %v1731, 0.0
        %v1764 = vmax.f32 %v1732, 0.0
        %v1765 = vmax.f32 %v1733, 0.0
        %v1766 = vmax.f32 %v1734, 0.0
        %v1767 = vmax.f32 %v1735, 0.0
        %v1768 = vmax.f32 %v1736, 0.0
        %v1769 = vmax.f32 %v1737, 0.0
        %v1770 = vmax.f32 %v1738, 0.0
        %v1771 = vmax.f32 %v1739, 0.0
        %v1772 = vmax.f32 %v1740, 0.0
        %v1773 = vmax.f32 %v1741, 0.0
        %v1774 = vmax.f32 %v1742, 0.0
        %v1775 = vmax.f32 %v1743, 0.0
        %v1776 = vmax.f32 %v1744, 0.0
        %1777 = vst [vmem:[%s341] sm:$0xff] %v1745
        %1778 = vst [vmem:[%s341 + $0x8] sm:$0xff] %v1746
        %1779 = vst [vmem:[%s341 + $0x10] sm:$0xff] %v1747
        %1780 = vst [vmem:[%s341 + $0x18] sm:$0xff] %v1748
        %1781 = vst [vmem:[%s341 + $0x20] sm:$0xff] %v1749
        %1782 = vst [vmem:[%s341 + $0x28] sm:$0xff] %v1750
        %1783 = vst [vmem:[%s341 + $0x30] sm:$0xff] %v1751
        %1784 = vst [vmem:[%s341 + $0x38] sm:$0xff] %v1752
        %1785 = vst [vmem:[%s341 + $0x40] sm:$0xff] %v1753
        %1786 = vst [vmem:[%s341 + $0x48] sm:$0xff] %v1754
        %1787 = vst [vmem:[%s341 + $0x50] sm:$0xff] %v1755
        %1788 = vst [vmem:[%s341 + $0x58] sm:$0xff] %v1756
        %1789 = vst [vmem:[%s341 + $0x60] sm:$0xff] %v1757
        %1790 = vst [vmem:[%s341 + $0x68] sm:$0xff] %v1758
        %1791 = vst [vmem:[%s341 + $0x70] sm:$0xff] %v1759
        %1792 = vst [vmem:[%s341 + $0x78] sm:$0xff] %v1760
        %1793 = vst [vmem:[%s341 + $0x80] sm:$0xff] %v1761
        %1794 = vst [vmem:[%s341 + $0x88] sm:$0xff] %v1762
        %1795 = vst [vmem:[%s341 + $0x90] sm:$0xff] %v1763
        %1796 = vst [vmem:[%s341 + $0x98] sm:$0xff] %v1764
        %1797 = vst [vmem:[%s341 + $0xa0] sm:$0xff] %v1765
        %1798 = vst [vmem:[%s341 + $0xa8] sm:$0xff] %v1766
        %1799 = vst [vmem:[%s341 + $0xb0] sm:$0xff] %v1767
        %1800 = vst [vmem:[%s341 + $0xb8] sm:$0xff] %v1768
        %1801 = vst [vmem:[%s341 + $0xc0] sm:$0xff] %v1769
        %1802 = vst [vmem:[%s341 + $0xc8] sm:$0xff] %v1770
        %1803 = vst [vmem:[%s341 + $0xd0] sm:$0xff] %v1771
        %1804 = vst [vmem:[%s341 + $0xd8] sm:$0xff] %v1772
        %1805 = vst [vmem:[%s341 + $0xe0] sm:$0xff] %v1773
        %1806 = vst [vmem:[%s341 + $0xe8] sm:$0xff] %v1774
        %1807 = vst [vmem:[%s341 + $0xf0] sm:$0xff] %v1775
        %1808 = vst [vmem:[%s341 + $0xf8] sm:$0xff] %v1776
        %s1809 = sand.u32 %s188, 1
        %s1810 = scalar_lea.sflag [#allocation4], %s1809
        %s1811 = sand.u32 %s188, 1
        %s1812 = smul.addr %s1811, 256
        %s1813 = scalar_lea.vmem [#allocation3], %s1812
        // Predicated region
        $region45: #{tpu_custom_call.1} parent=39 // pred_check
          %p1814 = pneg %p198
        $region46: #{tpu_custom_call.1} parent=39 // pred_check_branch
          %1816 = sbr.rel (%p1814) target = $region48
        $region47: #{tpu_custom_call.1} parent=39 // pred_region
          %s1817 = smul.u32 32, %s25
          %s1819 = ssub.s32 4096, 4096
          %1820 = vsyncadd %s1810, %s1819
          %s1821 = sadd.s32 %s26, %s1817
          %s1822 = smul.addr %s24, 32
          %s1823 = sadd.s32 %s1821, %s1822
          %s1824 = smul.addr %s1823, 128
          %s1825 = scalar_lea.hbm %s5, %s1824
          %s1826 = sshll.u32 %s1813, 4
          %s1827 = int_to_ptr.vmem [resolvable:$true] %s1826
          %1832 = dma.vmem_to_hbm [thread:$0]  %s1827, 4096, %s1825, %s1810, 128, 128, 8
        $region48: #{tpu_custom_call.1} parent=39 // pred_fallthru
          _
      $region40: #{tpu_custom_call.1} parent=5 // pred_fallthru
        _
      %p1833 = scmp.le.s32.totalorder 2, %s14
      // Predicated region
      $region49: #{tpu_custom_call.1} parent=5 // pred_check
        %p1834 = pneg %p1833
      $region50: #{tpu_custom_call.1} parent=5 // pred_check_branch
        %1836 = sbr.rel (%p1834) target = $region52
      $region51: #{tpu_custom_call.1} parent=5 // pred_region
        %s1837 = ssub.s32 %s14, 2
        // Predicated region
        $region53: #{tpu_custom_call.1} parent=51 // pred_check
          %p1838 = pneg %p204
        $region54: #{tpu_custom_call.1} parent=51 // pred_check_branch
          %1840 = sbr.rel (%p1838) target = $region56
        $region55: #{tpu_custom_call.1} parent=51 // pred_region
          %s1841 = sand.u32 %s189, 1
          %s1842 = scalar_lea.sflag [#allocation4], %s1841
          %s1843 = sand.u32 %s189, 1
          %s1844 = smul.addr %s1843, 256
          %s1845 = scalar_lea.vmem [#allocation3], %s1844
          %1846 = dma.done %s1842, 4096
        $region56: #{tpu_custom_call.1} parent=51 // pred_fallthru
          _
      $region52: #{tpu_custom_call.1} parent=5 // pred_fallthru
        _
    $region6: #{tpu_custom_call.1} parent=1 // loop_footer
      %s18 = sadd.s32 1, %s14
    $region7: #{tpu_custom_call.1} parent=1 // loop_footer_branch
      %13 = sbr.rel target = $region3
    $region8: #{tpu_custom_call.1} parent=1 // loop_exit
      _
    %1847 = vsyncpa [#allocation4], 1
    %s1848 = scalar_lea.sflag [#allocation4], 1
    %1849 = vsyncpa %s1848, 1

</llo_original>
